<compile_context>
chip_gen: v7x
topology: tpu7x:2x2x1
jax: 0.10.0
libtpu: 0.0.40
codegen_flags: <defaults>
</compile_context>

<pallas_src>
import jax
import jax.numpy as jnp
from jax.experimental import pallas as pl
from jax.experimental.pallas import tpu as pltpu


# ----------------------------------------------------------------------------
# Fused Pallas kernel: generator + discriminator features + losses + weighting
# ----------------------------------------------------------------------------
def _make_fused_kernel(n, d, latent, feat):
    F, L = feat, latent
    # packed weight slab column offsets: [dis_feat | enc1 | enc2 | dec^T]
    OFF_WF, OFF_W1, OFF_W2, OFF_WD = 0, F, F + L, F + 2 * L
    # packed bias slab column offsets: [dec_b | dis_feat_b | enc1_b | enc2_b | lv]
    OFF_BD, OFF_BF, OFF_B1, OFF_B2, OFF_LV = 0, d, d + F, d + F + L, d + F + 2 * L

    def kernel(x_ref, w_ref, b_ref, o_ref, stk_ref):
        f32 = jnp.float32
        bf16 = jnp.bfloat16

        x = x_ref[...]                            # (N, d) f32
        xb = x.astype(bf16)

        # static slices of the packed bf16 weight slab (one DMA for all four)
        wf = w_ref[:, OFF_WF:OFF_WF + F]          # (d, F)  dis_feat
        w1 = w_ref[:, OFF_W1:OFF_W1 + L]          # (d, L)  encoder 1
        w2 = w_ref[:, OFF_W2:OFF_W2 + L]          # (d, L)  encoder 2
        wdT = w_ref[:, OFF_WD:OFF_WD + L]         # (d, L)  decoder (transposed)

        # static slices of the packed f32 bias / log_var slab (one DMA)
        bd = b_ref[:, OFF_BD:OFF_BD + d]          # (1, d)
        bfeat = b_ref[:, OFF_BF:OFF_BF + F]       # (1, F)
        b1 = b_ref[:, OFF_B1:OFF_B1 + L]          # (1, L)
        b2 = b_ref[:, OFF_B2:OFF_B2 + L]          # (1, L)
        lv = b_ref[:, OFF_LV:OFF_LV + 3]          # (1, 3)

        # --- generator: encoder -> decoder -> encoder (bf16 MXU, f32 accum) --
        z = jnp.tanh(jnp.dot(xb, w1, preferred_element_type=f32) + b1)      # (N, L)
        xp = jnp.tanh(
            jax.lax.dot_general(z.astype(bf16), wdT,
                                dimension_numbers=(((1,), (1,)), ((), ())),
                                preferred_element_type=f32) + bd)            # (N, d)
        xpb = xp.astype(bf16)
        zp = jnp.tanh(jnp.dot(xpb, w2, preferred_element_type=f32) + b2)     # (N, L)

        # --- discriminator features: ONE matmul over stacked LHS [x ; x'] ----
        # (shared wf lives in VMEM once; the two feature matmuls are merged)
        stk_ref[0:n, :] = x
        stk_ref[n:2 * n, :] = xp
        stacked = stk_ref[...].astype(bf16)                                   # (2N, d)
        feats = jnp.tanh(jnp.dot(stacked, wf, preferred_element_type=f32)
                         + bfeat)                                             # (2N, F)
        feat_real = feats[0:n]
        feat_fake = feats[n:2 * n]

        # --- loss_function_gen reductions: adv=MSE(feat), con=L1(x), enc=MSE(z)
        d_adv = feat_fake - feat_real
        loss_adv = jnp.sum(d_adv * d_adv, keepdims=True) / d_adv.size         # (1,1)

        d_con = xp - x
        loss_con = jnp.sum(jnp.abs(d_con), keepdims=True) / d_con.size        # (1,1)

        d_enc = zp - z
        loss_enc = jnp.sum(d_enc * d_enc, keepdims=True) / d_enc.size         # (1,1)

        # --- uncertainty weighting: sum_i exp(-log_var_i)*loss_i + log_var_i -
        factors = jnp.exp(-lv)                                                # (1, 3)
        loss = (factors[:, 0:1] * loss_adv + lv[:, 0:1]
                + factors[:, 1:2] * loss_con + lv[:, 1:2]
                + factors[:, 2:3] * loss_enc + lv[:, 2:3])                    # (1,1)

        # --- pack results into a lane-dense (8, 128) slab ---------------------
        # lane 0 = loss, lanes 1..3 = factors (ADV, CON, ENC); rest zero.
        lane = jax.lax.broadcasted_iota(jnp.int32, (8, 128), 1)
        out = jnp.where(lane == 0, loss, 0.0)
        out = jnp.where(lane == 1, factors[:, 0:1], out)
        out = jnp.where(lane == 2, factors[:, 1:2], out)
        out = jnp.where(lane == 3, factors[:, 2:3], out)
        o_ref[...] = out.astype(o_ref.dtype)

    return kernel


def fused_multitask_forward(log_vars, x, model):
    """One pallas_call for the whole forward + loss.  Returns the (8,128) slab."""
    n = x.shape[0]
    x_flat = x.reshape(n, -1).astype(jnp.float32)
    d = x_flat.shape[1]
    L, F = model.latent_dim, model.feat_dim

    # log_vars rides at the tail of the packed f32 bias slab (no tiny extra DMA)
    b_slab = jnp.concatenate(
        [model.bias_packed, log_vars.reshape(1, 3).astype(jnp.float32)], axis=-1)

    kernel = _make_fused_kernel(n, d, L, F)

    # TODO(synk): for production-sized C*H*W, tile the d axis (grid over d,
    # reduction axis last and "arbitrary", f32 partial-sum scratch with pl.when
    # init/finalize) so the weight stream overlaps compute and fits v7x's
    # 64 MiB VMEM; add a "parallel" batch/tile axis there so both v7x TCs run.
    return pl.pallas_call(
        kernel,
        grid=(1,),
        in_specs=[
            pl.BlockSpec(x_flat.shape, lambda i: (0, 0)),
            pl.BlockSpec(model.w_packed.shape, lambda i: (0, 0)),
            pl.BlockSpec(b_slab.shape, lambda i: (0, 0)),
        ],
        out_specs=pl.BlockSpec((8, 128), lambda i: (0, 0)),
        out_shape=jax.ShapeDtypeStruct((8, 128), jnp.float32),
        scratch_shapes=[pltpu.VMEM((2 * n, d), jnp.float32)],
        compiler_params=pltpu.CompilerParams(
            dimension_semantics=("arbitrary",),
            vmem_limit_bytes=32 * 1024 * 1024),
    )(x_flat, model.w_packed, b_slab)


# ----------------------------------------------------------------------------
# Synthetic GANomaly-like model (the wrapped `model` in the original code is
# abstract).  Only holds parameters; compute happens in the fused kernel.
# Unused dis_cls heads removed — MultiTaskLoss only consumes x', z, z',
# feat_real, feat_fake.
# ----------------------------------------------------------------------------
class GanomalyLikeModel:
    def __init__(self, key, x_shape, latent_dim=32, feat_dim=128):
        n, c, h, w = x_shape
        self.x_shape = x_shape
        self.latent_dim = latent_dim
        self.feat_dim = feat_dim
        d = c * h * w
        self.d = d
        keys = jax.random.split(key, 8)
        s = 0.02
        bf16 = jnp.bfloat16
        f32 = jnp.float32
        # Matmul weights stored in bf16 (MXU-native, half the HBM/VMEM bytes);
        # biases and all accumulation stay f32.
        self.enc1_w = (s * jax.random.normal(keys[0], (d, latent_dim))).astype(bf16)
        self.enc1_b = (s * jax.random.normal(keys[1], (1, latent_dim))).astype(f32)
        self.dec_w = (s * jax.random.normal(keys[2], (latent_dim, d))).astype(bf16)
        self.dec_b = (s * jax.random.normal(keys[3], (1, d))).astype(f32)
        self.enc2_w = (s * jax.random.normal(keys[4], (d, latent_dim))).astype(bf16)
        self.enc2_b = (s * jax.random.normal(keys[5], (1, latent_dim))).astype(f32)
        self.dis_feat_w = (s * jax.random.normal(keys[6], (d, feat_dim))).astype(bf16)
        self.dis_feat_b = (s * jax.random.normal(keys[7], (1, feat_dim))).astype(f32)

        # Packed slabs (built ONCE): one bf16 weight DMA + one f32 bias DMA.
        # Weight columns: [dis_feat | enc1 | enc2 | dec^T]; decoder stored
        # transposed (d, L) and consumed via dot_general contracting on dim 1.
        self.w_packed = jnp.concatenate(
            [self.dis_feat_w, self.enc1_w, self.enc2_w,
             jnp.transpose(self.dec_w)], axis=-1).astype(bf16)        # (d, F+3L)
        # Bias columns: [dec_b | dis_feat_b | enc1_b | enc2_b] (log_vars is
        # appended at call time).
        self.bias_packed = jnp.concatenate(
            [self.dec_b, self.dis_feat_b, self.enc1_b, self.enc2_b],
            axis=-1).astype(f32)                                       # (1, d+F+2L)


# ----------------------------------------------------------------------------
# MultiTaskLoss equivalent
# ----------------------------------------------------------------------------
class MultiTaskLoss:
    def __init__(self, model, n_losses=3):
        assert n_losses == 3
        self.model = model
        # nn.Parameter(torch.zeros(n_losses))
        # TODO(synk): log_vars is a trainable parameter in PyTorch; only the
        # forward pass is implemented here (no gradient/update path).
        self.log_vars = jnp.zeros((n_losses,), jnp.float32)
        # Host-side list computed ONCE (the per-step device_get/float() sync
        # was removed from forward; recompute this if log_vars is ever updated).
        self._log_vars_list = [0.0] * n_losses

    def forward(self, x):
        out = fused_multitask_forward(self.log_vars, x, self.model)
        # Lazy device-side slices of the (8,128) slab (row 0 holds the data;
        # no host transfer / blocking here).
        loss = out[0, 0]
        factors = {'ADV': out[0, 1], 'CON': out[0, 2], 'ENC': out[0, 3]}
        return loss, self._log_vars_list, factors


# ----------------------------------------------------------------------------
# Pure-JAX reference (same bf16 weights / casts, f32 accumulation) for a
# sanity check of the fused kernel.
# ----------------------------------------------------------------------------
def _reference_forward(log_vars, x, model):
    f32, bf16 = jnp.float32, jnp.bfloat16
    n = x.shape[0]
    xf = x.reshape(n, -1).astype(f32)
    xb = xf.astype(bf16)
    z = jnp.tanh(jnp.dot(xb, model.enc1_w, preferred_element_type=f32) + model.enc1_b)
    xp = jnp.tanh(jnp.dot(z.astype(bf16), model.dec_w, preferred_element_type=f32)
                  + model.dec_b)
    xpb = xp.astype(bf16)
    zp = jnp.tanh(jnp.dot(xpb, model.enc2_w, preferred_element_type=f32) + model.enc2_b)
    fr = jnp.tanh(jnp.dot(xb, model.dis_feat_w, preferred_element_type=f32)
                  + model.dis_feat_b)
    ff = jnp.tanh(jnp.dot(xpb, model.dis_feat_w, preferred_element_type=f32)
                  + model.dis_feat_b)
    loss_adv = jnp.mean((ff - fr) ** 2)
    loss_con = jnp.mean(jnp.abs(xp - xf))
    loss_enc = jnp.mean((zp - z) ** 2)
    factors = jnp.exp(-log_vars)
    loss = (factors[0] * loss_adv + log_vars[0]
            + factors[1] * loss_con + log_vars[1]
            + factors[2] * loss_enc + log_vars[2])
    return loss, factors


# ----------------------------------------------------------------------------
if __name__ == "__main__":
    key = jax.random.PRNGKey(0)
    k_x, k_model = jax.random.split(key)

    x = jax.random.normal(k_x, (2, 4, 16, 16), dtype=jnp.float32)  # NCHW
    model = GanomalyLikeModel(k_model, x_shape=x.shape, latent_dim=32, feat_dim=128)
    mtl = MultiTaskLoss(model, n_losses=3)

    loss, log_vars_list, factors = mtl.forward(x)
    jax.block_until_ready(loss)
    jax.block_until_ready(factors['ADV'])

    # Numerical sanity check against the pure-JAX reference (host sync is OK
    # here — this is the test harness, not the training step).
    ref_loss, _ = _reference_forward(mtl.log_vars, x, model)
    assert abs(float(loss) - float(ref_loss)) <= 2e-2 * max(abs(float(ref_loss)), 1.0), \
        (float(loss), float(ref_loss))

    print("KERNEL_OK")
</pallas_src>

<mosaic_0001>
module attributes {stable_mosaic.version = 11 : i64} {
  func.func @kernel(%arg0: i32, %arg1: memref<2x1024xf32, #tpu.memory_space<vmem>>, %arg2: memref<1024x224xbf16, #tpu.memory_space<vmem>>, %arg3: memref<1x1219xf32, #tpu.memory_space<vmem>>, %arg4: memref<8x128xf32, #tpu.memory_space<vmem>>, %arg5: memref<4x1024xf32, #tpu.memory_space<vmem>>) attributes {dimension_semantics = [#tpu.dimension_semantics<arbitrary>], iteration_bounds = array<i64: 1>, scalar_prefetch = 0 : i64, scratch_operands = 1 : i64, tpu.core_type = #tpu.core_type<tc>, window_params = [{pipeline_mode = #tpu.pipeline_mode<synchronous>, transform_indices = @transform_0, window_bounds = array<i64: 2, 1024>}, {pipeline_mode = #tpu.pipeline_mode<synchronous>, transform_indices = @transform_1, window_bounds = array<i64: 1024, 224>}, {pipeline_mode = #tpu.pipeline_mode<synchronous>, transform_indices = @transform_2, window_bounds = array<i64: 1, 1219>}, {pipeline_mode = #tpu.pipeline_mode<synchronous>, transform_indices = @transform_3, window_bounds = array<i64: 8, 128>}]} {
    %c0 = arith.constant 0 : index
    %c0_0 = arith.constant 0 : index
    %0 = vector.load %arg1[%c0, %c0_0] : memref<2x1024xf32, #tpu.memory_space<vmem>>, vector<2x1024xf32>
    %1 = arith.truncf %0 : vector<2x1024xf32> to vector<2x1024xbf16>
    %c0_1 = arith.constant 0 : index
    %c0_2 = arith.constant 0 : index
    %2 = vector.load %arg2[%c0_1, %c0_2] : memref<1024x224xbf16, #tpu.memory_space<vmem>>, vector<1024x128xbf16>
    %c0_3 = arith.constant 0 : index
    %c128 = arith.constant 128 : index
    %3 = vector.load %arg2[%c0_3, %c128] : memref<1024x224xbf16, #tpu.memory_space<vmem>>, vector<1024x32xbf16>
    %c0_4 = arith.constant 0 : index
    %c160 = arith.constant 160 : index
    %4 = vector.load %arg2[%c0_4, %c160] : memref<1024x224xbf16, #tpu.memory_space<vmem>>, vector<1024x32xbf16>
    %c0_5 = arith.constant 0 : index
    %c192 = arith.constant 192 : index
    %5 = vector.load %arg2[%c0_5, %c192] : memref<1024x224xbf16, #tpu.memory_space<vmem>>, vector<1024x32xbf16>
    %c0_6 = arith.constant 0 : index
    %c0_7 = arith.constant 0 : index
    %6 = vector.load %arg3[%c0_6, %c0_7] : memref<1x1219xf32, #tpu.memory_space<vmem>>, vector<1x1024xf32>
    %c0_8 = arith.constant 0 : index
    %c1024 = arith.constant 1024 : index
    %7 = vector.load %arg3[%c0_8, %c1024] : memref<1x1219xf32, #tpu.memory_space<vmem>>, vector<1x128xf32>
    %c0_9 = arith.constant 0 : index
    %c1152 = arith.constant 1152 : index
    %8 = vector.load %arg3[%c0_9, %c1152] : memref<1x1219xf32, #tpu.memory_space<vmem>>, vector<1x32xf32>
    %c0_10 = arith.constant 0 : index
    %c1184 = arith.constant 1184 : index
    %9 = vector.load %arg3[%c0_10, %c1184] : memref<1x1219xf32, #tpu.memory_space<vmem>>, vector<1x32xf32>
    %c0_11 = arith.constant 0 : index
    %c1216 = arith.constant 1216 : index
    %10 = vector.load %arg3[%c0_11, %c1216] : memref<1x1219xf32, #tpu.memory_space<vmem>>, vector<1x3xf32>
    %cst = arith.constant dense<0.000000e+00> : vector<2x32xf32>
    %11 = tpu.matmul %1, %3, %cst {dimension_numbers = #tpu.dot_dimension_numbers<[1], [0], [0], [1], [0, 0, 1, 1], [], []>} : vector<2x1024xbf16>, vector<1024x32xbf16>, vector<2x32xf32> -> vector<2x32xf32>
    %12 = vector.broadcast %8 : vector<1x32xf32> to vector<2x32xf32>
    %13 = arith.addf %11, %12 : vector<2x32xf32>
    %14 = math.tanh %13 : vector<2x32xf32>
    %15 = arith.truncf %14 : vector<2x32xf32> to vector<2x32xbf16>
    %cst_12 = arith.constant dense<0.000000e+00> : vector<2x1024xf32>
    %16 = tpu.matmul %15, %5, %cst_12 {dimension_numbers = #tpu.dot_dimension_numbers<[1], [1], [0], [0], [0, 0, 1, 0], [], []>} : vector<2x32xbf16>, vector<1024x32xbf16>, vector<2x1024xf32> -> vector<2x1024xf32>
    %17 = vector.broadcast %6 : vector<1x1024xf32> to vector<2x1024xf32>
    %18 = arith.addf %16, %17 : vector<2x1024xf32>
    %19 = math.tanh %18 : vector<2x1024xf32>
    %20 = arith.truncf %19 : vector<2x1024xf32> to vector<2x1024xbf16>
    %cst_13 = arith.constant dense<0.000000e+00> : vector<2x32xf32>
    %21 = tpu.matmul %20, %4, %cst_13 {dimension_numbers = #tpu.dot_dimension_numbers<[1], [0], [0], [1], [0, 0, 1, 1], [], []>} : vector<2x1024xbf16>, vector<1024x32xbf16>, vector<2x32xf32> -> vector<2x32xf32>
    %22 = vector.broadcast %9 : vector<1x32xf32> to vector<2x32xf32>
    %23 = arith.addf %21, %22 : vector<2x32xf32>
    %24 = math.tanh %23 : vector<2x32xf32>
    %c0_14 = arith.constant 0 : index
    %c0_15 = arith.constant 0 : index
    %25 = vector.load %arg5[%c0_14, %c0_15] : memref<4x1024xf32, #tpu.memory_space<vmem>>, vector<2x1024xf32>
    tpu.vector_store %arg5[%c0_14, %c0_15], %0 {strides = array<i32>} : memref<4x1024xf32, #tpu.memory_space<vmem>>, vector<2x1024xf32>,
    %c2 = arith.constant 2 : index
    %c0_16 = arith.constant 0 : index
    %26 = vector.load %arg5[%c2, %c0_16] : memref<4x1024xf32, #tpu.memory_space<vmem>>, vector<2x1024xf32>
    tpu.vector_store %arg5[%c2, %c0_16], %19 {strides = array<i32>} : memref<4x1024xf32, #tpu.memory_space<vmem>>, vector<2x1024xf32>,
    %c0_17 = arith.constant 0 : index
    %c0_18 = arith.constant 0 : index
    %27 = vector.load %arg5[%c0_17, %c0_18] : memref<4x1024xf32, #tpu.memory_space<vmem>>, vector<4x1024xf32>
    %28 = arith.truncf %27 : vector<4x1024xf32> to vector<4x1024xbf16>
    %cst_19 = arith.constant dense<0.000000e+00> : vector<4x128xf32>
    %29 = tpu.matmul %28, %2, %cst_19 {dimension_numbers = #tpu.dot_dimension_numbers<[1], [0], [0], [1], [0, 0, 1, 1], [], []>} : vector<4x1024xbf16>, vector<1024x128xbf16>, vector<4x128xf32> -> vector<4x128xf32>
    %30 = vector.broadcast %7 : vector<1x128xf32> to vector<4x128xf32>
    %31 = arith.addf %29, %30 : vector<4x128xf32>
    %32 = math.tanh %31 : vector<4x128xf32>
    %33 = vector.extract_strided_slice %32 {offsets = [0, 0], sizes = [2, 128], strides = [1, 1]} : vector<4x128xf32> to vector<2x128xf32>
    %34 = vector.extract_strided_slice %32 {offsets = [2, 0], sizes = [2, 128], strides = [1, 1]} : vector<4x128xf32> to vector<2x128xf32>
    %35 = arith.subf %34, %33 : vector<2x128xf32>
    %36 = arith.mulf %35, %35 : vector<2x128xf32>
    %37 = vector.shape_cast %36 : vector<2x128xf32> to vector<1x2x128xf32>
    %cst_20 = arith.constant dense<0.000000e+00> : vector<1xf32>
    %38 = vector.multi_reduction <add>, %37, %cst_20 [1, 2] : vector<1x2x128xf32> to vector<1xf32>
    %39 = vector.shape_cast %38 : vector<1xf32> to vector<1x1x1xf32>
    %40 = vector.extract %39[0, 0, 0] : f32 from vector<1x1x1xf32>
    %41 = vector.broadcast %40 : f32 to vector<1x1xf32>
    %cst_21 = arith.constant 2.560000e+02 : f32
    %42 = vector.broadcast %cst_21 : f32 to vector<1x1xf32>
    %43 = arith.divf %41, %42 : vector<1x1xf32>
    %44 = arith.subf %19, %0 : vector<2x1024xf32>
    %45 = math.absf %44 : vector<2x1024xf32>
    %46 = vector.shape_cast %45 : vector<2x1024xf32> to vector<1x2x1024xf32>
    %cst_22 = arith.constant dense<0.000000e+00> : vector<1xf32>
    %47 = vector.multi_reduction <add>, %46, %cst_22 [1, 2] : vector<1x2x1024xf32> to vector<1xf32>
    %48 = vector.shape_cast %47 : vector<1xf32> to vector<1x1x1xf32>
    %49 = vector.extract %48[0, 0, 0] : f32 from vector<1x1x1xf32>
    %50 = vector.broadcast %49 : f32 to vector<1x1xf32>
    %cst_23 = arith.constant 2.048000e+03 : f32
    %51 = vector.broadcast %cst_23 : f32 to vector<1x1xf32>
    %52 = arith.divf %50, %51 : vector<1x1xf32>
    %53 = arith.subf %24, %14 : vector<2x32xf32>
    %54 = arith.mulf %53, %53 : vector<2x32xf32>
    %55 = vector.shape_cast %54 : vector<2x32xf32> to vector<1x2x32xf32>
    %cst_24 = arith.constant dense<0.000000e+00> : vector<1xf32>
    %56 = vector.multi_reduction <add>, %55, %cst_24 [1, 2] : vector<1x2x32xf32> to vector<1xf32>
    %57 = vector.shape_cast %56 : vector<1xf32> to vector<1x1x1xf32>
    %58 = vector.extract %57[0, 0, 0] : f32 from vector<1x1x1xf32>
    %59 = vector.broadcast %58 : f32 to vector<1x1xf32>
    %cst_25 = arith.constant 6.400000e+01 : f32
    %60 = vector.broadcast %cst_25 : f32 to vector<1x1xf32>
    %61 = arith.divf %59, %60 : vector<1x1xf32>
    %cst_26 = arith.constant 0.000000e+00 : f32
    %62 = vector.broadcast %cst_26 : f32 to vector<1x3xf32>
    %63 = arith.subf %62, %10 : vector<1x3xf32>
    %64 = math.exp %63 : vector<1x3xf32>
    %65 = vector.extract_strided_slice %64 {offsets = [0, 0], sizes = [1, 1], strides = [1, 1]} : vector<1x3xf32> to vector<1x1xf32>
    %66 = arith.mulf %65, %43 : vector<1x1xf32>
    %67 = vector.extract_strided_slice %10 {offsets = [0, 0], sizes = [1, 1], strides = [1, 1]} : vector<1x3xf32> to vector<1x1xf32>
    %68 = arith.addf %66, %67 : vector<1x1xf32>
    %69 = vector.extract_strided_slice %64 {offsets = [0, 1], sizes = [1, 1], strides = [1, 1]} : vector<1x3xf32> to vector<1x1xf32>
    %70 = arith.mulf %69, %52 : vector<1x1xf32>
    %71 = arith.addf %68, %70 : vector<1x1xf32>
    %72 = vector.extract_strided_slice %10 {offsets = [0, 1], sizes = [1, 1], strides = [1, 1]} : vector<1x3xf32> to vector<1x1xf32>
    %73 = arith.addf %71, %72 : vector<1x1xf32>
    %74 = vector.extract_strided_slice %64 {offsets = [0, 2], sizes = [1, 1], strides = [1, 1]} : vector<1x3xf32> to vector<1x1xf32>
    %75 = arith.mulf %74, %61 : vector<1x1xf32>
    %76 = arith.addf %73, %75 : vector<1x1xf32>
    %77 = vector.extract_strided_slice %10 {offsets = [0, 2], sizes = [1, 1], strides = [1, 1]} : vector<1x3xf32> to vector<1x1xf32>
    %78 = arith.addf %76, %77 : vector<1x1xf32>
    %79 = tpu.iota {dimensions = array<i32: 1>} : vector<8x128xi32>
    %c0_i32 = arith.constant 0 : i32
    %80 = vector.broadcast %c0_i32 : i32 to vector<8x128xi32>
    %81 = arith.cmpi eq, %79, %80 : vector<8x128xi32>
    %cst_27 = arith.constant 0.000000e+00 : f32
    %82 = vector.shape_cast %78 : vector<1x1xf32> to vector<1x1xf32>
    %83 = vector.broadcast %82 : vector<1x1xf32> to vector<8x128xf32>
    %84 = vector.broadcast %cst_27 : f32 to vector<8x128xf32>
    %85 = arith.select %81, %83, %84 : vector<8x128xi1>, vector<8x128xf32>
    %c1_i32 = arith.constant 1 : i32
    %86 = vector.broadcast %c1_i32 : i32 to vector<8x128xi32>
    %87 = arith.cmpi eq, %79, %86 : vector<8x128xi32>
    %88 = vector.extract_strided_slice %64 {offsets = [0, 0], sizes = [1, 1], strides = [1, 1]} : vector<1x3xf32> to vector<1x1xf32>
    %89 = vector.shape_cast %88 : vector<1x1xf32> to vector<1x1xf32>
    %90 = vector.broadcast %89 : vector<1x1xf32> to vector<8x128xf32>
    %91 = arith.select %87, %90, %85 : vector<8x128xi1>, vector<8x128xf32>
    %c2_i32 = arith.constant 2 : i32
    %92 = vector.broadcast %c2_i32 : i32 to vector<8x128xi32>
    %93 = arith.cmpi eq, %79, %92 : vector<8x128xi32>
    %94 = vector.extract_strided_slice %64 {offsets = [0, 1], sizes = [1, 1], strides = [1, 1]} : vector<1x3xf32> to vector<1x1xf32>
    %95 = vector.shape_cast %94 : vector<1x1xf32> to vector<1x1xf32>
    %96 = vector.broadcast %95 : vector<1x1xf32> to vector<8x128xf32>
    %97 = arith.select %93, %96, %91 : vector<8x128xi1>, vector<8x128xf32>
    %c3_i32 = arith.constant 3 : i32
    %98 = vector.broadcast %c3_i32 : i32 to vector<8x128xi32>
    %99 = arith.cmpi eq, %79, %98 : vector<8x128xi32>
    %100 = vector.extract_strided_slice %64 {offsets = [0, 2], sizes = [1, 1], strides = [1, 1]} : vector<1x3xf32> to vector<1x1xf32>
    %101 = vector.shape_cast %100 : vector<1x1xf32> to vector<1x1xf32>
    %102 = vector.broadcast %101 : vector<1x1xf32> to vector<8x128xf32>
    %103 = arith.select %99, %102, %97 : vector<8x128xi1>, vector<8x128xf32>
    %c0_28 = arith.constant 0 : index
    %c0_29 = arith.constant 0 : index
    %104 = vector.load %arg4[%c0_28, %c0_29] : memref<8x128xf32, #tpu.memory_space<vmem>>, vector<8x128xf32>
    tpu.vector_store %arg4[%c0_28, %c0_29], %103 {strides = array<i32>} : memref<8x128xf32, #tpu.memory_space<vmem>>, vector<8x128xf32>,
    return
  }
  func.func @transform_0(%arg0: i32) -> (i32, i32) {
    %c0_i32 = arith.constant 0 : i32
    %c0_i32_0 = arith.constant 0 : i32
    %c0_i32_1 = arith.constant 0 : i32
    return %c0_i32, %c0_i32_0 : i32, i32
  }
  func.func @transform_1(%arg0: i32) -> (i32, i32) {
    %c0_i32 = arith.constant 0 : i32
    %c0_i32_0 = arith.constant 0 : i32
    %c0_i32_1 = arith.constant 0 : i32
    return %c0_i32, %c0_i32_0 : i32, i32
  }
  func.func @transform_2(%arg0: i32) -> (i32, i32) {
    %c0_i32 = arith.constant 0 : i32
    %c0_i32_0 = arith.constant 0 : i32
    %c0_i32_1 = arith.constant 0 : i32
    return %c0_i32, %c0_i32_0 : i32, i32
  }
  func.func @transform_3(%arg0: i32) -> (i32, i32) {
    %c0_i32 = arith.constant 0 : i32
    %c0_i32_0 = arith.constant 0 : i32
    %c0_i32_1 = arith.constant 0 : i32
    return %c0_i32, %c0_i32_0 : i32, i32
  }
}

</mosaic_0001>

<llo_original>
// kernel: tpu_custom_call.1
$region0: #{tpu_custom_call.1}
  #allocation0 [shape = 'u32[]', space=smem, size = 0x4, offset = 0x4, fixed_abs, tag = 'smem constant byte address 0x4 - core index']
  #allocation1 [shape = 'u32[144,128]{1,0:T(1,128)}', space=vmem, size = 0x12000, scoped, tag = 'internal scratch']
  #allocation2 [shape = 'f32[4,1024]{1,0:T(4,128)}', space=vmem, size = 0x4000, scoped, tag = 'scratch operand']
  %s0 = inlined_call_operand.vmem [shape: f32[2,1024], index: 0, kind: input, shape index: {}]
  %s1 = inlined_call_operand.vmem [shape: bf16[1024,224], index: 1, kind: input, shape index: {}]
  %s2 = inlined_call_operand.vmem [shape: f32[1,1219], index: 2, kind: input, shape index: {}]
  %s3 = inlined_call_operand.hbm [shape: f32[8,128], index: 3, kind: output, shape index: {}]
  %s4 = sld [smem:[#allocation0]]
  $region22: #{tpu_custom_call.1} parent=0
    _
  %s6 = ssub.s32 1, %s4
  %s7 = scalar_select 0, %s6, %s4
  $region1: #{tpu_custom_call.1} parent=0
    #allocation3 [shape = 'u8[4096]{0}', space=vmem, size = 0x1000, scoped, tag = 'output window, operand 0, single buffered']
    #allocation4 [shape = 's32[1]{0}', space=sflag, size = 0x4, scoped, tag = 'scoped memory for tpu_custom_call.1']
    %8 = vsyncpa [#allocation4], 0
    // Predicated region
    $region2: #{tpu_custom_call.1} parent=1 // pred_check
      _
    $region3: #{tpu_custom_call.1} parent=1 // pred_check_branch
      %10 = sbr.rel (0) target = $region5
    $region4: #{tpu_custom_call.1} parent=1 // pred_region
      _
    $region5: #{tpu_custom_call.1} parent=1 // pred_fallthru
      _
    // Predicated region
    $region6: #{tpu_custom_call.1} parent=1 // pred_check
      _
    $region7: #{tpu_custom_call.1} parent=1 // pred_check_branch
      %12 = sbr.rel (0) target = $region9
    $region8: #{tpu_custom_call.1} parent=1 // pred_region
      _
    $region9: #{tpu_custom_call.1} parent=1 // pred_fallthru
      _
    // Predicated region
    $region10: #{tpu_custom_call.1} parent=1 // pred_check
      _
    $region11: #{tpu_custom_call.1} parent=1 // pred_check_branch
      %14 = sbr.rel (0) target = $region13
    $region12: #{tpu_custom_call.1} parent=1 // pred_region
      _
    $region13: #{tpu_custom_call.1} parent=1 // pred_fallthru
      _
    %v16 = vld [vmem:[%s0] sm:$0xff]
    %v17 = vld [vmem:[%s0 + $0x8] sm:$0xff]
    %v20 = vcombine.high %v16, %v16
    %v22 = vunpack.c.l.s4 1983009808
    %v23 = vunpack.c.0.s8 %v22
    %v24 = vlaneseq
    %v25 = vshrl.u32 %v24, 7
    %v26 = vsub.s32 %v23, %v25
    %v27 = vrot.slane %v16, %v26
    %v29 = vunpack.c.l.s4 1983009808
    %v30 = vunpack.c.0.s8 %v29
    %v31 = vlaneseq
    %v32 = vshrl.u32 %v31, 7
    %v33 = vsub.s32 %v30, %v32
    %v34 = vrot.slane %v20, %v33
    %v35 = vcombine.high %v27, %v27
    %v36 = vcombine.high %v34, %v34
    %v37 = vcombine.high %v17, %v17
    %v39 = vunpack.c.l.s4 1983009808
    %v40 = vunpack.c.0.s8 %v39
    %v41 = vlaneseq
    %v42 = vshrl.u32 %v41, 7
    %v43 = vsub.s32 %v40, %v42
    %v44 = vrot.slane %v17, %v43
    %v46 = vunpack.c.l.s4 1983009808
    %v47 = vunpack.c.0.s8 %v46
    %v48 = vlaneseq
    %v49 = vshrl.u32 %v48, 7
    %v50 = vsub.s32 %v47, %v49
    %v51 = vrot.slane %v37, %v50
    %v52 = vcombine.high %v44, %v44
    %v53 = vcombine.high %v51, %v51
    %v62 = vpack.c.bf16 %v27, %v27
    %v63 = vpack.c.bf16 %v35, %v35
    %v64 = vpack.c.bf16 %v34, %v34
    %v65 = vpack.c.bf16 %v36, %v36
    %v66 = vpack.c.bf16 %v44, %v44
    %v67 = vpack.c.bf16 %v52, %v52
    %v68 = vpack.c.bf16 %v51, %v51
    %v69 = vpack.c.bf16 %v53, %v53
    %v70 = vld [vmem:[%s1] sm:$0xf]
    %v71 = vld [vmem:[%s1 + $0x8] sm:$0xf]
    %v72 = vld [vmem:[%s1 + $0x10] sm:$0xf]
    %v73 = vld [vmem:[%s1 + $0x18] sm:$0xf]
    %v74 = vld [vmem:[%s1 + $0x20] sm:$0xf]
    %v75 = vld [vmem:[%s1 + $0x28] sm:$0xf]
    %v76 = vld [vmem:[%s1 + $0x30] sm:$0xf]
    %v77 = vld [vmem:[%s1 + $0x38] sm:$0xf]
    %v78 = vld [vmem:[%s1 + $0x40] sm:$0xf]
    %v79 = vld [vmem:[%s1 + $0x48] sm:$0xf]
    %v80 = vld [vmem:[%s1 + $0x50] sm:$0xf]
    %v81 = vld [vmem:[%s1 + $0x58] sm:$0xf]
    %v82 = vld [vmem:[%s1 + $0x60] sm:$0xf]
    %v83 = vld [vmem:[%s1 + $0x68] sm:$0xf]
    %v84 = vld [vmem:[%s1 + $0x70] sm:$0xf]
    %v85 = vld [vmem:[%s1 + $0x78] sm:$0xf]
    %v86 = vld [vmem:[%s1 + $0x80] sm:$0xf]
    %v87 = vld [vmem:[%s1 + $0x88] sm:$0xf]
    %v88 = vld [vmem:[%s1 + $0x90] sm:$0xf]
    %v89 = vld [vmem:[%s1 + $0x98] sm:$0xf]
    %v90 = vld [vmem:[%s1 + $0xa0] sm:$0xf]
    %v91 = vld [vmem:[%s1 + $0xa8] sm:$0xf]
    %v92 = vld [vmem:[%s1 + $0xb0] sm:$0xf]
    %v93 = vld [vmem:[%s1 + $0xb8] sm:$0xf]
    %v94 = vld [vmem:[%s1 + $0xc0] sm:$0xf]
    %v95 = vld [vmem:[%s1 + $0xc8] sm:$0xf]
    %v96 = vld [vmem:[%s1 + $0xd0] sm:$0xf]
    %v97 = vld [vmem:[%s1 + $0xd8] sm:$0xf]
    %v98 = vld [vmem:[%s1 + $0xe0] sm:$0xf]
    %v99 = vld [vmem:[%s1 + $0xe8] sm:$0xf]
    %v100 = vld [vmem:[%s1 + $0xf0] sm:$0xf]
    %v101 = vld [vmem:[%s1 + $0xf8] sm:$0xf]
    %v102 = vld [vmem:[%s1 + $0x100] sm:$0xf]
    %v103 = vld [vmem:[%s1 + $0x108] sm:$0xf]
    %v104 = vld [vmem:[%s1 + $0x110] sm:$0xf]
    %v105 = vld [vmem:[%s1 + $0x118] sm:$0xf]
    %v106 = vld [vmem:[%s1 + $0x120] sm:$0xf]
    %v107 = vld [vmem:[%s1 + $0x128] sm:$0xf]
    %v108 = vld [vmem:[%s1 + $0x130] sm:$0xf]
    %v109 = vld [vmem:[%s1 + $0x138] sm:$0xf]
    %v110 = vld [vmem:[%s1 + $0x140] sm:$0xf]
    %v111 = vld [vmem:[%s1 + $0x148] sm:$0xf]
    %v112 = vld [vmem:[%s1 + $0x150] sm:$0xf]
    %v113 = vld [vmem:[%s1 + $0x158] sm:$0xf]
    %v114 = vld [vmem:[%s1 + $0x160] sm:$0xf]
    %v115 = vld [vmem:[%s1 + $0x168] sm:$0xf]
    %v116 = vld [vmem:[%s1 + $0x170] sm:$0xf]
    %v117 = vld [vmem:[%s1 + $0x178] sm:$0xf]
    %v118 = vld [vmem:[%s1 + $0x180] sm:$0xf]
    %v119 = vld [vmem:[%s1 + $0x188] sm:$0xf]
    %v120 = vld [vmem:[%s1 + $0x190] sm:$0xf]
    %v121 = vld [vmem:[%s1 + $0x198] sm:$0xf]
    %v122 = vld [vmem:[%s1 + $0x1a0] sm:$0xf]
    %v123 = vld [vmem:[%s1 + $0x1a8] sm:$0xf]
    %v124 = vld [vmem:[%s1 + $0x1b0] sm:$0xf]
    %v125 = vld [vmem:[%s1 + $0x1b8] sm:$0xf]
    %v126 = vld [vmem:[%s1 + $0x1c0] sm:$0xf]
    %v127 = vld [vmem:[%s1 + $0x1c8] sm:$0xf]
    %v128 = vld [vmem:[%s1 + $0x1d0] sm:$0xf]
    %v129 = vld [vmem:[%s1 + $0x1d8] sm:$0xf]
    %v130 = vld [vmem:[%s1 + $0x1e0] sm:$0xf]
    %v131 = vld [vmem:[%s1 + $0x1e8] sm:$0xf]
    %v132 = vld [vmem:[%s1 + $0x1f0] sm:$0xf]
    %v133 = vld [vmem:[%s1 + $0x1f8] sm:$0xf]
    %v134 = vld [vmem:[%s1 + $0x200] sm:$0xf]
    %v135 = vld [vmem:[%s1 + $0x208] sm:$0xf]
    %v136 = vld [vmem:[%s1 + $0x210] sm:$0xf]
    %v137 = vld [vmem:[%s1 + $0x218] sm:$0xf]
    %v138 = vld [vmem:[%s1 + $0x220] sm:$0xf]
    %v139 = vld [vmem:[%s1 + $0x228] sm:$0xf]
    %v140 = vld [vmem:[%s1 + $0x230] sm:$0xf]
    %v141 = vld [vmem:[%s1 + $0x238] sm:$0xf]
    %v142 = vld [vmem:[%s1 + $0x240] sm:$0xf]
    %v143 = vld [vmem:[%s1 + $0x248] sm:$0xf]
    %v144 = vld [vmem:[%s1 + $0x250] sm:$0xf]
    %v145 = vld [vmem:[%s1 + $0x258] sm:$0xf]
    %v146 = vld [vmem:[%s1 + $0x260] sm:$0xf]
    %v147 = vld [vmem:[%s1 + $0x268] sm:$0xf]
    %v148 = vld [vmem:[%s1 + $0x270] sm:$0xf]
    %v149 = vld [vmem:[%s1 + $0x278] sm:$0xf]
    %v150 = vld [vmem:[%s1 + $0x280] sm:$0xf]
    %v151 = vld [vmem:[%s1 + $0x288] sm:$0xf]
    %v152 = vld [vmem:[%s1 + $0x290] sm:$0xf]
    %v153 = vld [vmem:[%s1 + $0x298] sm:$0xf]
    %v154 = vld [vmem:[%s1 + $0x2a0] sm:$0xf]
    %v155 = vld [vmem:[%s1 + $0x2a8] sm:$0xf]
    %v156 = vld [vmem:[%s1 + $0x2b0] sm:$0xf]
    %v157 = vld [vmem:[%s1 + $0x2b8] sm:$0xf]
    %v158 = vld [vmem:[%s1 + $0x2c0] sm:$0xf]
    %v159 = vld [vmem:[%s1 + $0x2c8] sm:$0xf]
    %v160 = vld [vmem:[%s1 + $0x2d0] sm:$0xf]
    %v161 = vld [vmem:[%s1 + $0x2d8] sm:$0xf]
    %v162 = vld [vmem:[%s1 + $0x2e0] sm:$0xf]
    %v163 = vld [vmem:[%s1 + $0x2e8] sm:$0xf]
    %v164 = vld [vmem:[%s1 + $0x2f0] sm:$0xf]
    %v165 = vld [vmem:[%s1 + $0x2f8] sm:$0xf]
    %v166 = vld [vmem:[%s1 + $0x300] sm:$0xf]
    %v167 = vld [vmem:[%s1 + $0x308] sm:$0xf]
    %v168 = vld [vmem:[%s1 + $0x310] sm:$0xf]
    %v169 = vld [vmem:[%s1 + $0x318] sm:$0xf]
    %v170 = vld [vmem:[%s1 + $0x320] sm:$0xf]
    %v171 = vld [vmem:[%s1 + $0x328] sm:$0xf]
    %v172 = vld [vmem:[%s1 + $0x330] sm:$0xf]
    %v173 = vld [vmem:[%s1 + $0x338] sm:$0xf]
    %v174 = vld [vmem:[%s1 + $0x340] sm:$0xf]
    %v175 = vld [vmem:[%s1 + $0x348] sm:$0xf]
    %v176 = vld [vmem:[%s1 + $0x350] sm:$0xf]
    %v177 = vld [vmem:[%s1 + $0x358] sm:$0xf]
    %v178 = vld [vmem:[%s1 + $0x360] sm:$0xf]
    %v179 = vld [vmem:[%s1 + $0x368] sm:$0xf]
    %v180 = vld [vmem:[%s1 + $0x370] sm:$0xf]
    %v181 = vld [vmem:[%s1 + $0x378] sm:$0xf]
    %v182 = vld [vmem:[%s1 + $0x380] sm:$0xf]
    %v183 = vld [vmem:[%s1 + $0x388] sm:$0xf]
    %v184 = vld [vmem:[%s1 + $0x390] sm:$0xf]
    %v185 = vld [vmem:[%s1 + $0x398] sm:$0xf]
    %v186 = vld [vmem:[%s1 + $0x3a0] sm:$0xf]
    %v187 = vld [vmem:[%s1 + $0x3a8] sm:$0xf]
    %v188 = vld [vmem:[%s1 + $0x3b0] sm:$0xf]
    %v189 = vld [vmem:[%s1 + $0x3b8] sm:$0xf]
    %v190 = vld [vmem:[%s1 + $0x3c0] sm:$0xf]
    %v191 = vld [vmem:[%s1 + $0x3c8] sm:$0xf]
    %v192 = vld [vmem:[%s1 + $0x3d0] sm:$0xf]
    %v193 = vld [vmem:[%s1 + $0x3d8] sm:$0xf]
    %v194 = vld [vmem:[%s1 + $0x3e0] sm:$0xf]
    %v195 = vld [vmem:[%s1 + $0x3e8] sm:$0xf]
    %v196 = vld [vmem:[%s1 + $0x3f0] sm:$0xf]
    %v197 = vld [vmem:[%s1 + $0x3f8] sm:$0xf]
    %v198 = vld [vmem:[%s1 + $0x4] sm:$0xf]
    %v199 = vld [vmem:[%s1 + $0xc] sm:$0xf]
    %v200 = vld [vmem:[%s1 + $0x14] sm:$0xf]
    %v201 = vld [vmem:[%s1 + $0x1c] sm:$0xf]
    %v202 = vld [vmem:[%s1 + $0x24] sm:$0xf]
    %v203 = vld [vmem:[%s1 + $0x2c] sm:$0xf]
    %v204 = vld [vmem:[%s1 + $0x34] sm:$0xf]
    %v205 = vld [vmem:[%s1 + $0x3c] sm:$0xf]
    %v206 = vld [vmem:[%s1 + $0x44] sm:$0xf]
    %v207 = vld [vmem:[%s1 + $0x4c] sm:$0xf]
    %v208 = vld [vmem:[%s1 + $0x54] sm:$0xf]
    %v209 = vld [vmem:[%s1 + $0x5c] sm:$0xf]
    %v210 = vld [vmem:[%s1 + $0x64] sm:$0xf]
    %v211 = vld [vmem:[%s1 + $0x6c] sm:$0xf]
    %v212 = vld [vmem:[%s1 + $0x74] sm:$0xf]
    %v213 = vld [vmem:[%s1 + $0x7c] sm:$0xf]
    %v214 = vld [vmem:[%s1 + $0x84] sm:$0xf]
    %v215 = vld [vmem:[%s1 + $0x8c] sm:$0xf]
    %v216 = vld [vmem:[%s1 + $0x94] sm:$0xf]
    %v217 = vld [vmem:[%s1 + $0x9c] sm:$0xf]
    %v218 = vld [vmem:[%s1 + $0xa4] sm:$0xf]
    %v219 = vld [vmem:[%s1 + $0xac] sm:$0xf]
    %v220 = vld [vmem:[%s1 + $0xb4] sm:$0xf]
    %v221 = vld [vmem:[%s1 + $0xbc] sm:$0xf]
    %v222 = vld [vmem:[%s1 + $0xc4] sm:$0xf]
    %v223 = vld [vmem:[%s1 + $0xcc] sm:$0xf]
    %v224 = vld [vmem:[%s1 + $0xd4] sm:$0xf]
    %v225 = vld [vmem:[%s1 + $0xdc] sm:$0xf]
    %v226 = vld [vmem:[%s1 + $0xe4] sm:$0xf]
    %v227 = vld [vmem:[%s1 + $0xec] sm:$0xf]
    %v228 = vld [vmem:[%s1 + $0xf4] sm:$0xf]
    %v229 = vld [vmem:[%s1 + $0xfc] sm:$0xf]
    %v230 = vld [vmem:[%s1 + $0x104] sm:$0xf]
    %v231 = vld [vmem:[%s1 + $0x10c] sm:$0xf]
    %v232 = vld [vmem:[%s1 + $0x114] sm:$0xf]
    %v233 = vld [vmem:[%s1 + $0x11c] sm:$0xf]
    %v234 = vld [vmem:[%s1 + $0x124] sm:$0xf]
    %v235 = vld [vmem:[%s1 + $0x12c] sm:$0xf]
    %v236 = vld [vmem:[%s1 + $0x134] sm:$0xf]
    %v237 = vld [vmem:[%s1 + $0x13c] sm:$0xf]
    %v238 = vld [vmem:[%s1 + $0x144] sm:$0xf]
    %v239 = vld [vmem:[%s1 + $0x14c] sm:$0xf]
    %v240 = vld [vmem:[%s1 + $0x154] sm:$0xf]
    %v241 = vld [vmem:[%s1 + $0x15c] sm:$0xf]
    %v242 = vld [vmem:[%s1 + $0x164] sm:$0xf]
    %v243 = vld [vmem:[%s1 + $0x16c] sm:$0xf]
    %v244 = vld [vmem:[%s1 + $0x174] sm:$0xf]
    %v245 = vld [vmem:[%s1 + $0x17c] sm:$0xf]
    %v246 = vld [vmem:[%s1 + $0x184] sm:$0xf]
    %v247 = vld [vmem:[%s1 + $0x18c] sm:$0xf]
    %v248 = vld [vmem:[%s1 + $0x194] sm:$0xf]
    %v249 = vld [vmem:[%s1 + $0x19c] sm:$0xf]
    %v250 = vld [vmem:[%s1 + $0x1a4] sm:$0xf]
    %v251 = vld [vmem:[%s1 + $0x1ac] sm:$0xf]
    %v252 = vld [vmem:[%s1 + $0x1b4] sm:$0xf]
    %v253 = vld [vmem:[%s1 + $0x1bc] sm:$0xf]
    %v254 = vld [vmem:[%s1 + $0x1c4] sm:$0xf]
    %v255 = vld [vmem:[%s1 + $0x1cc] sm:$0xf]
    %v256 = vld [vmem:[%s1 + $0x1d4] sm:$0xf]
    %v257 = vld [vmem:[%s1 + $0x1dc] sm:$0xf]
    %v258 = vld [vmem:[%s1 + $0x1e4] sm:$0xf]
    %v259 = vld [vmem:[%s1 + $0x1ec] sm:$0xf]
    %v260 = vld [vmem:[%s1 + $0x1f4] sm:$0xf]
    %v261 = vld [vmem:[%s1 + $0x1fc] sm:$0xf]
    %v262 = vld [vmem:[%s1 + $0x204] sm:$0xf]
    %v263 = vld [vmem:[%s1 + $0x20c] sm:$0xf]
    %v264 = vld [vmem:[%s1 + $0x214] sm:$0xf]
    %v265 = vld [vmem:[%s1 + $0x21c] sm:$0xf]
    %v266 = vld [vmem:[%s1 + $0x224] sm:$0xf]
    %v267 = vld [vmem:[%s1 + $0x22c] sm:$0xf]
    %v268 = vld [vmem:[%s1 + $0x234] sm:$0xf]
    %v269 = vld [vmem:[%s1 + $0x23c] sm:$0xf]
    %v270 = vld [vmem:[%s1 + $0x244] sm:$0xf]
    %v271 = vld [vmem:[%s1 + $0x24c] sm:$0xf]
    %v272 = vld [vmem:[%s1 + $0x254] sm:$0xf]
    %v273 = vld [vmem:[%s1 + $0x25c] sm:$0xf]
    %v274 = vld [vmem:[%s1 + $0x264] sm:$0xf]
    %v275 = vld [vmem:[%s1 + $0x26c] sm:$0xf]
    %v276 = vld [vmem:[%s1 + $0x274] sm:$0xf]
    %v277 = vld [vmem:[%s1 + $0x27c] sm:$0xf]
    %v278 = vld [vmem:[%s1 + $0x284] sm:$0xf]
    %v279 = vld [vmem:[%s1 + $0x28c] sm:$0xf]
    %v280 = vld [vmem:[%s1 + $0x294] sm:$0xf]
    %v281 = vld [vmem:[%s1 + $0x29c] sm:$0xf]
    %v282 = vld [vmem:[%s1 + $0x2a4] sm:$0xf]
    %v283 = vld [vmem:[%s1 + $0x2ac] sm:$0xf]
    %v284 = vld [vmem:[%s1 + $0x2b4] sm:$0xf]
    %v285 = vld [vmem:[%s1 + $0x2bc] sm:$0xf]
    %v286 = vld [vmem:[%s1 + $0x2c4] sm:$0xf]
    %v287 = vld [vmem:[%s1 + $0x2cc] sm:$0xf]
    %v288 = vld [vmem:[%s1 + $0x2d4] sm:$0xf]
    %v289 = vld [vmem:[%s1 + $0x2dc] sm:$0xf]
    %v290 = vld [vmem:[%s1 + $0x2e4] sm:$0xf]
    %v291 = vld [vmem:[%s1 + $0x2ec] sm:$0xf]
    %v292 = vld [vmem:[%s1 + $0x2f4] sm:$0xf]
    %v293 = vld [vmem:[%s1 + $0x2fc] sm:$0xf]
    %v294 = vld [vmem:[%s1 + $0x304] sm:$0xf]
    %v295 = vld [vmem:[%s1 + $0x30c] sm:$0xf]
    %v296 = vld [vmem:[%s1 + $0x314] sm:$0xf]
    %v297 = vld [vmem:[%s1 + $0x31c] sm:$0xf]
    %v298 = vld [vmem:[%s1 + $0x324] sm:$0xf]
    %v299 = vld [vmem:[%s1 + $0x32c] sm:$0xf]
    %v300 = vld [vmem:[%s1 + $0x334] sm:$0xf]
    %v301 = vld [vmem:[%s1 + $0x33c] sm:$0xf]
    %v302 = vld [vmem:[%s1 + $0x344] sm:$0xf]
    %v303 = vld [vmem:[%s1 + $0x34c] sm:$0xf]
    %v304 = vld [vmem:[%s1 + $0x354] sm:$0xf]
    %v305 = vld [vmem:[%s1 + $0x35c] sm:$0xf]
    %v306 = vld [vmem:[%s1 + $0x364] sm:$0xf]
    %v307 = vld [vmem:[%s1 + $0x36c] sm:$0xf]
    %v308 = vld [vmem:[%s1 + $0x374] sm:$0xf]
    %v309 = vld [vmem:[%s1 + $0x37c] sm:$0xf]
    %v310 = vld [vmem:[%s1 + $0x384] sm:$0xf]
    %v311 = vld [vmem:[%s1 + $0x38c] sm:$0xf]
    %v312 = vld [vmem:[%s1 + $0x394] sm:$0xf]
    %v313 = vld [vmem:[%s1 + $0x39c] sm:$0xf]
    %v314 = vld [vmem:[%s1 + $0x3a4] sm:$0xf]
    %v315 = vld [vmem:[%s1 + $0x3ac] sm:$0xf]
    %v316 = vld [vmem:[%s1 + $0x3b4] sm:$0xf]
    %v317 = vld [vmem:[%s1 + $0x3bc] sm:$0xf]
    %v318 = vld [vmem:[%s1 + $0x3c4] sm:$0xf]
    %v319 = vld [vmem:[%s1 + $0x3cc] sm:$0xf]
    %v320 = vld [vmem:[%s1 + $0x3d4] sm:$0xf]
    %v321 = vld [vmem:[%s1 + $0x3dc] sm:$0xf]
    %v322 = vld [vmem:[%s1 + $0x3e4] sm:$0xf]
    %v323 = vld [vmem:[%s1 + $0x3ec] sm:$0xf]
    %v324 = vld [vmem:[%s1 + $0x3f4] sm:$0xf]
    %v325 = vld [vmem:[%s1 + $0x3fc] sm:$0xf]
    %v326 = vld [vmem:[%s2] sm:$0xff]
    %v327 = vld [vmem:[%s2 + $0x8] sm:$0x1]
    %v328 = vld [vmem:[%s2 + $0x9] sm:$0x1]
    %v330 = vlaneseq
    %v331 = vshrl.u32 %v330, 7
    %v332 = vsub.s32 0, %v331
    %v333 = vrot.slane %v328, %v332
    %v463 = vunpack.c.l.b16 %v198
    %v464 = vunpack.c.l.b16 %v199
    %v465 = vunpack.c.l.b16 %v200
    %v466 = vunpack.c.l.b16 %v201
    %v467 = vunpack.c.l.b16 %v202
    %v468 = vunpack.c.l.b16 %v203
    %v469 = vunpack.c.l.b16 %v204
    %v470 = vunpack.c.l.b16 %v205
    %v471 = vunpack.c.l.b16 %v206
    %v472 = vunpack.c.l.b16 %v207
    %v473 = vunpack.c.l.b16 %v208
    %v474 = vunpack.c.l.b16 %v209
    %v475 = vunpack.c.l.b16 %v210
    %v476 = vunpack.c.l.b16 %v211
    %v477 = vunpack.c.l.b16 %v212
    %v478 = vunpack.c.l.b16 %v213
    %v479 = vunpack.c.l.b16 %v214
    %v480 = vunpack.c.l.b16 %v215
    %v481 = vunpack.c.l.b16 %v216
    %v482 = vunpack.c.l.b16 %v217
    %v483 = vunpack.c.l.b16 %v218
    %v484 = vunpack.c.l.b16 %v219
    %v485 = vunpack.c.l.b16 %v220
    %v486 = vunpack.c.l.b16 %v221
    %v487 = vunpack.c.l.b16 %v222
    %v488 = vunpack.c.l.b16 %v223
    %v489 = vunpack.c.l.b16 %v224
    %v490 = vunpack.c.l.b16 %v225
    %v491 = vunpack.c.l.b16 %v226
    %v492 = vunpack.c.l.b16 %v227
    %v493 = vunpack.c.l.b16 %v228
    %v494 = vunpack.c.l.b16 %v229
    %v495 = vunpack.c.l.b16 %v230
    %v496 = vunpack.c.l.b16 %v231
    %v497 = vunpack.c.l.b16 %v232
    %v498 = vunpack.c.l.b16 %v233
    %v499 = vunpack.c.l.b16 %v234
    %v500 = vunpack.c.l.b16 %v235
    %v501 = vunpack.c.l.b16 %v236
    %v502 = vunpack.c.l.b16 %v237
    %v503 = vunpack.c.l.b16 %v238
    %v504 = vunpack.c.l.b16 %v239
    %v505 = vunpack.c.l.b16 %v240
    %v506 = vunpack.c.l.b16 %v241
    %v507 = vunpack.c.l.b16 %v242
    %v508 = vunpack.c.l.b16 %v243
    %v509 = vunpack.c.l.b16 %v244
    %v510 = vunpack.c.l.b16 %v245
    %v511 = vunpack.c.l.b16 %v246
    %v512 = vunpack.c.l.b16 %v247
    %v513 = vunpack.c.l.b16 %v248
    %v514 = vunpack.c.l.b16 %v249
    %v515 = vunpack.c.l.b16 %v250
    %v516 = vunpack.c.l.b16 %v251
    %v517 = vunpack.c.l.b16 %v252
    %v518 = vunpack.c.l.b16 %v253
    %v519 = vunpack.c.l.b16 %v254
    %v520 = vunpack.c.l.b16 %v255
    %v521 = vunpack.c.l.b16 %v256
    %v522 = vunpack.c.l.b16 %v257
    %v523 = vunpack.c.l.b16 %v258
    %v524 = vunpack.c.l.b16 %v259
    %v525 = vunpack.c.l.b16 %v260
    %v526 = vunpack.c.l.b16 %v261
    %v527 = vunpack.c.l.b16 %v262
    %v528 = vunpack.c.l.b16 %v263
    %v529 = vunpack.c.l.b16 %v264
    %v530 = vunpack.c.l.b16 %v265
    %v531 = vunpack.c.l.b16 %v266
    %v532 = vunpack.c.l.b16 %v267
    %v533 = vunpack.c.l.b16 %v268
    %v534 = vunpack.c.l.b16 %v269
    %v535 = vunpack.c.l.b16 %v270
    %v536 = vunpack.c.l.b16 %v271
    %v537 = vunpack.c.l.b16 %v272
    %v538 = vunpack.c.l.b16 %v273
    %v539 = vunpack.c.l.b16 %v274
    %v540 = vunpack.c.l.b16 %v275
    %v541 = vunpack.c.l.b16 %v276
    %v542 = vunpack.c.l.b16 %v277
    %v543 = vunpack.c.l.b16 %v278
    %v544 = vunpack.c.l.b16 %v279
    %v545 = vunpack.c.l.b16 %v280
    %v546 = vunpack.c.l.b16 %v281
    %v547 = vunpack.c.l.b16 %v282
    %v548 = vunpack.c.l.b16 %v283
    %v549 = vunpack.c.l.b16 %v284
    %v550 = vunpack.c.l.b16 %v285
    %v551 = vunpack.c.l.b16 %v286
    %v552 = vunpack.c.l.b16 %v287
    %v553 = vunpack.c.l.b16 %v288
    %v554 = vunpack.c.l.b16 %v289
    %v555 = vunpack.c.l.b16 %v290
    %v556 = vunpack.c.l.b16 %v291
    %v557 = vunpack.c.l.b16 %v292
    %v558 = vunpack.c.l.b16 %v293
    %v559 = vunpack.c.l.b16 %v294
    %v560 = vunpack.c.l.b16 %v295
    %v561 = vunpack.c.l.b16 %v296
    %v562 = vunpack.c.l.b16 %v297
    %v563 = vunpack.c.l.b16 %v298
    %v564 = vunpack.c.l.b16 %v299
    %v565 = vunpack.c.l.b16 %v300
    %v566 = vunpack.c.l.b16 %v301
    %v567 = vunpack.c.l.b16 %v302
    %v568 = vunpack.c.l.b16 %v303
    %v569 = vunpack.c.l.b16 %v304
    %v570 = vunpack.c.l.b16 %v305
    %v571 = vunpack.c.l.b16 %v306
    %v572 = vunpack.c.l.b16 %v307
    %v573 = vunpack.c.l.b16 %v308
    %v574 = vunpack.c.l.b16 %v309
    %v575 = vunpack.c.l.b16 %v310
    %v576 = vunpack.c.l.b16 %v311
    %v577 = vunpack.c.l.b16 %v312
    %v578 = vunpack.c.l.b16 %v313
    %v579 = vunpack.c.l.b16 %v314
    %v580 = vunpack.c.l.b16 %v315
    %v581 = vunpack.c.l.b16 %v316
    %v582 = vunpack.c.l.b16 %v317
    %v583 = vunpack.c.l.b16 %v318
    %v584 = vunpack.c.l.b16 %v319
    %v585 = vunpack.c.l.b16 %v320
    %v586 = vunpack.c.l.b16 %v321
    %v587 = vunpack.c.l.b16 %v322
    %v588 = vunpack.c.l.b16 %v323
    %v589 = vunpack.c.l.b16 %v324
    %v590 = vunpack.c.l.b16 %v325
    %v591 = vpack.c.b16 %v464, %v463
    %v592 = vpack.c.b16 %v466, %v465
    %v593 = vpack.c.b16 %v468, %v467
    %v594 = vpack.c.b16 %v470, %v469
    %v595 = vpack.c.b16 %v472, %v471
    %v596 = vpack.c.b16 %v474, %v473
    %v597 = vpack.c.b16 %v476, %v475
    %v598 = vpack.c.b16 %v478, %v477
    %v599 = vpack.c.b16 %v480, %v479
    %v600 = vpack.c.b16 %v482, %v481
    %v601 = vpack.c.b16 %v484, %v483
    %v602 = vpack.c.b16 %v486, %v485
    %v603 = vpack.c.b16 %v488, %v487
    %v604 = vpack.c.b16 %v490, %v489
    %v605 = vpack.c.b16 %v492, %v491
    %v606 = vpack.c.b16 %v494, %v493
    %v607 = vpack.c.b16 %v496, %v495
    %v608 = vpack.c.b16 %v498, %v497
    %v609 = vpack.c.b16 %v500, %v499
    %v610 = vpack.c.b16 %v502, %v501
    %v611 = vpack.c.b16 %v504, %v503
    %v612 = vpack.c.b16 %v506, %v505
    %v613 = vpack.c.b16 %v508, %v507
    %v614 = vpack.c.b16 %v510, %v509
    %v615 = vpack.c.b16 %v512, %v511
    %v616 = vpack.c.b16 %v514, %v513
    %v617 = vpack.c.b16 %v516, %v515
    %v618 = vpack.c.b16 %v518, %v517
    %v619 = vpack.c.b16 %v520, %v519
    %v620 = vpack.c.b16 %v522, %v521
    %v621 = vpack.c.b16 %v524, %v523
    %v622 = vpack.c.b16 %v526, %v525
    %v623 = vpack.c.b16 %v528, %v527
    %v624 = vpack.c.b16 %v530, %v529
    %v625 = vpack.c.b16 %v532, %v531
    %v626 = vpack.c.b16 %v534, %v533
    %v627 = vpack.c.b16 %v536, %v535
    %v628 = vpack.c.b16 %v538, %v537
    %v629 = vpack.c.b16 %v540, %v539
    %v630 = vpack.c.b16 %v542, %v541
    %v631 = vpack.c.b16 %v544, %v543
    %v632 = vpack.c.b16 %v546, %v545
    %v633 = vpack.c.b16 %v548, %v547
    %v634 = vpack.c.b16 %v550, %v549
    %v635 = vpack.c.b16 %v552, %v551
    %v636 = vpack.c.b16 %v554, %v553
    %v637 = vpack.c.b16 %v556, %v555
    %v638 = vpack.c.b16 %v558, %v557
    %v639 = vpack.c.b16 %v560, %v559
    %v640 = vpack.c.b16 %v562, %v561
    %v641 = vpack.c.b16 %v564, %v563
    %v642 = vpack.c.b16 %v566, %v565
    %v643 = vpack.c.b16 %v568, %v567
    %v644 = vpack.c.b16 %v570, %v569
    %v645 = vpack.c.b16 %v572, %v571
    %v646 = vpack.c.b16 %v574, %v573
    %v647 = vpack.c.b16 %v576, %v575
    %v648 = vpack.c.b16 %v578, %v577
    %v649 = vpack.c.b16 %v580, %v579
    %v650 = vpack.c.b16 %v582, %v581
    %v651 = vpack.c.b16 %v584, %v583
    %v652 = vpack.c.b16 %v586, %v585
    %v653 = vpack.c.b16 %v588, %v587
    %v654 = vpack.c.b16 %v590, %v589
    %719 = vmatprep.subr.bf16.mxu0 0
    %720 = vmatpush1.bf16.msra.mxu0 %v591
    %721 = vmatprep.subr.bf16.mxu0 0
    %722 = vmatpush1.bf16.msra.mxu0 %v592
    %723 = vmatprep.subr.bf16.mxu0 0
    %724 = vmatpush1.bf16.msra.mxu0 %v593
    %725 = vmatprep.subr.bf16.mxu0 0
    %726 = vmatpush1.bf16.msra.mxu0 %v594
    %727 = vmatprep.subr.bf16.mxu0 0
    %728 = vmatpush1.bf16.msra.mxu0 %v595
    %729 = vmatprep.subr.bf16.mxu0 0
    %730 = vmatpush1.bf16.msra.mxu0 %v596
    %731 = vmatprep.subr.bf16.mxu0 0
    %732 = vmatpush1.bf16.msra.mxu0 %v597
    %733 = vmatprep.subr.bf16.mxu0 0
    %734 = vmatpush1.bf16.msra.mxu0 %v598
    %735 = vmatprep.subr.bf16.mxu0 0
    %736 = vmatpush1.bf16.msra.mxu0 %v599
    %737 = vmatprep.subr.bf16.mxu0 0
    %738 = vmatpush1.bf16.msra.mxu0 %v600
    %739 = vmatprep.subr.bf16.mxu0 0
    %740 = vmatpush1.bf16.msra.mxu0 %v601
    %741 = vmatprep.subr.bf16.mxu0 0
    %742 = vmatpush1.bf16.msra.mxu0 %v602
    %743 = vmatprep.subr.bf16.mxu0 0
    %744 = vmatpush1.bf16.msra.mxu0 %v603
    %745 = vmatprep.subr.bf16.mxu0 0
    %746 = vmatpush1.bf16.msra.mxu0 %v604
    %747 = vmatprep.subr.bf16.mxu0 0
    %748 = vmatpush1.bf16.msra.mxu0 %v605
    %749 = vmatprep.subr.bf16.mxu0 0
    %750 = vmatpush1.bf16.msra.mxu0 %v606
    %751 = vmatprep.mubr.bf16.mxu0 %v63
    %752 = vmatmul.mubr.bf16.gmra.mrb[0].mxu0 %v62
    %v753 = vpop.f32.mrb[0].mxu0
    %v754 = vadd.f32 %v333, %v753
    %v755 = vpop.f32.mrb[0].mxu0
    %v756 = vpop.f32.mrb[0].mxu0
    %v757 = vpop.f32.mrb[0].mxu0
    %758 = vdwg.mxu0
    %759 = vmatprep.subr.bf16.mxu0 0
    %760 = vmatpush1.bf16.msra.mxu0 %v607
    %761 = vmatprep.subr.bf16.mxu0 0
    %762 = vmatpush1.bf16.msra.mxu0 %v608
    %763 = vmatprep.subr.bf16.mxu0 0
    %764 = vmatpush1.bf16.msra.mxu0 %v609
    %765 = vmatprep.subr.bf16.mxu0 0
    %766 = vmatpush1.bf16.msra.mxu0 %v610
    %767 = vmatprep.subr.bf16.mxu0 0
    %768 = vmatpush1.bf16.msra.mxu0 %v611
    %769 = vmatprep.subr.bf16.mxu0 0
    %770 = vmatpush1.bf16.msra.mxu0 %v612
    %771 = vmatprep.subr.bf16.mxu0 0
    %772 = vmatpush1.bf16.msra.mxu0 %v613
    %773 = vmatprep.subr.bf16.mxu0 0
    %774 = vmatpush1.bf16.msra.mxu0 %v614
    %775 = vmatprep.subr.bf16.mxu0 0
    %776 = vmatpush1.bf16.msra.mxu0 %v615
    %777 = vmatprep.subr.bf16.mxu0 0
    %778 = vmatpush1.bf16.msra.mxu0 %v616
    %779 = vmatprep.subr.bf16.mxu0 0
    %780 = vmatpush1.bf16.msra.mxu0 %v617
    %781 = vmatprep.subr.bf16.mxu0 0
    %782 = vmatpush1.bf16.msra.mxu0 %v618
    %783 = vmatprep.subr.bf16.mxu0 0
    %784 = vmatpush1.bf16.msra.mxu0 %v619
    %785 = vmatprep.subr.bf16.mxu0 0
    %786 = vmatpush1.bf16.msra.mxu0 %v620
    %787 = vmatprep.subr.bf16.mxu0 0
    %788 = vmatpush1.bf16.msra.mxu0 %v621
    %789 = vmatprep.subr.bf16.mxu0 0
    %790 = vmatpush1.bf16.msra.mxu0 %v622
    %791 = vmatprep.mubr.bf16.mxu0 %v65
    %792 = vmatmul.mubr.bf16.gmra.mrb[0].mxu0 %v64
    %v793 = vpop.f32.mrb[0].mxu0
    %v794 = vadd.f32 %v754, %v793
    %v795 = vpop.f32.mrb[0].mxu0
    %v796 = vpop.f32.mrb[0].mxu0
    %v797 = vpop.f32.mrb[0].mxu0
    %798 = vdwg.mxu0
    %799 = vmatprep.subr.bf16.mxu0 0
    %800 = vmatpush1.bf16.msra.mxu0 %v623
    %801 = vmatprep.subr.bf16.mxu0 0
    %802 = vmatpush1.bf16.msra.mxu0 %v624
    %803 = vmatprep.subr.bf16.mxu0 0
    %804 = vmatpush1.bf16.msra.mxu0 %v625
    %805 = vmatprep.subr.bf16.mxu0 0
    %806 = vmatpush1.bf16.msra.mxu0 %v626
    %807 = vmatprep.subr.bf16.mxu0 0
    %808 = vmatpush1.bf16.msra.mxu0 %v627
    %809 = vmatprep.subr.bf16.mxu0 0
    %810 = vmatpush1.bf16.msra.mxu0 %v628
    %811 = vmatprep.subr.bf16.mxu0 0
    %812 = vmatpush1.bf16.msra.mxu0 %v629
    %813 = vmatprep.subr.bf16.mxu0 0
    %814 = vmatpush1.bf16.msra.mxu0 %v630
    %815 = vmatprep.subr.bf16.mxu0 0
    %816 = vmatpush1.bf16.msra.mxu0 %v631
    %817 = vmatprep.subr.bf16.mxu0 0
    %818 = vmatpush1.bf16.msra.mxu0 %v632
    %819 = vmatprep.subr.bf16.mxu0 0
    %820 = vmatpush1.bf16.msra.mxu0 %v633
    %821 = vmatprep.subr.bf16.mxu0 0
    %822 = vmatpush1.bf16.msra.mxu0 %v634
    %823 = vmatprep.subr.bf16.mxu0 0
    %824 = vmatpush1.bf16.msra.mxu0 %v635
    %825 = vmatprep.subr.bf16.mxu0 0
    %826 = vmatpush1.bf16.msra.mxu0 %v636
    %827 = vmatprep.subr.bf16.mxu0 0
    %828 = vmatpush1.bf16.msra.mxu0 %v637
    %829 = vmatprep.subr.bf16.mxu0 0
    %830 = vmatpush1.bf16.msra.mxu0 %v638
    %831 = vmatprep.mubr.bf16.mxu0 %v67
    %832 = vmatmul.mubr.bf16.gmra.mrb[0].mxu0 %v66
    %v833 = vpop.f32.mrb[0].mxu0
    %v834 = vadd.f32 %v794, %v833
    %v835 = vpop.f32.mrb[0].mxu0
    %v836 = vpop.f32.mrb[0].mxu0
    %v837 = vpop.f32.mrb[0].mxu0
    %838 = vdwg.mxu0
    %839 = vmatprep.subr.bf16.mxu0 0
    %840 = vmatpush1.bf16.msra.mxu0 %v639
    %841 = vmatprep.subr.bf16.mxu0 0
    %842 = vmatpush1.bf16.msra.mxu0 %v640
    %843 = vmatprep.subr.bf16.mxu0 0
    %844 = vmatpush1.bf16.msra.mxu0 %v641
    %845 = vmatprep.subr.bf16.mxu0 0
    %846 = vmatpush1.bf16.msra.mxu0 %v642
    %847 = vmatprep.subr.bf16.mxu0 0
    %848 = vmatpush1.bf16.msra.mxu0 %v643
    %849 = vmatprep.subr.bf16.mxu0 0
    %850 = vmatpush1.bf16.msra.mxu0 %v644
    %851 = vmatprep.subr.bf16.mxu0 0
    %852 = vmatpush1.bf16.msra.mxu0 %v645
    %853 = vmatprep.subr.bf16.mxu0 0
    %854 = vmatpush1.bf16.msra.mxu0 %v646
    %855 = vmatprep.subr.bf16.mxu0 0
    %856 = vmatpush1.bf16.msra.mxu0 %v647
    %857 = vmatprep.subr.bf16.mxu0 0
    %858 = vmatpush1.bf16.msra.mxu0 %v648
    %859 = vmatprep.subr.bf16.mxu0 0
    %860 = vmatpush1.bf16.msra.mxu0 %v649
    %861 = vmatprep.subr.bf16.mxu0 0
    %862 = vmatpush1.bf16.msra.mxu0 %v650
    %863 = vmatprep.subr.bf16.mxu0 0
    %864 = vmatpush1.bf16.msra.mxu0 %v651
    %865 = vmatprep.subr.bf16.mxu0 0
    %866 = vmatpush1.bf16.msra.mxu0 %v652
    %867 = vmatprep.subr.bf16.mxu0 0
    %868 = vmatpush1.bf16.msra.mxu0 %v653
    %869 = vmatprep.subr.bf16.mxu0 0
    %870 = vmatpush1.bf16.msra.mxu0 %v654
    %871 = vmatprep.mubr.bf16.mxu0 %v69
    %872 = vmatmul.mubr.bf16.gmra.mrb[0].mxu0 %v68
    %v873 = vpop.f32.mrb[0].mxu0
    %v874 = vadd.f32 %v834, %v873
    %v875 = vpop.f32.mrb[0].mxu0
    %v876 = vpop.f32.mrb[0].mxu0
    %v877 = vpop.f32.mrb[0].mxu0
    %878 = vdwg.mxu0
    %v879 = vtanh.pop %v874
    %v880 = vpack.c.bf16 %v879, %v879
    %v882 = vlaneseq
    %v883 = vshrl.u32 %v882, 7
    %v884 = vsub.s32 0, %v883
    %v885 = vrot.slane %v326, %v884
    %v886 = vlaneseq
    %v887 = vshrl.u32 %v886, 7
    %v888 = vsub.s32 1, %v887
    %v889 = vrot.slane %v326, %v888
    %v890 = vlaneseq
    %v891 = vshrl.u32 %v890, 7
    %v892 = vsub.s32 2, %v891
    %v893 = vrot.slane %v326, %v892
    %v894 = vlaneseq
    %v895 = vshrl.u32 %v894, 7
    %v896 = vsub.s32 3, %v895
    %v897 = vrot.slane %v326, %v896
    %v898 = vlaneseq
    %v899 = vshrl.u32 %v898, 7
    %v900 = vsub.s32 4, %v899
    %v901 = vrot.slane %v326, %v900
    %v902 = vlaneseq
    %v903 = vshrl.u32 %v902, 7
    %v904 = vsub.s32 5, %v903
    %v905 = vrot.slane %v326, %v904
    %v906 = vlaneseq
    %v907 = vshrl.u32 %v906, 7
    %v908 = vsub.s32 6, %v907
    %v909 = vrot.slane %v326, %v908
    %v910 = vlaneseq
    %v911 = vshrl.u32 %v910, 7
    %v912 = vsub.s32 7, %v911
    %v913 = vrot.slane %v326, %v912
    %922 = vrot.lane.b32.xlu0 %v591, 64
    %v923 = vpop.permute.xlu0 %922
    %924 = vrot.lane.b32.xlu0 %v592, 64
    %v925 = vpop.permute.xlu0 %924
    %926 = vrot.lane.b32.xlu0 %v593, 64
    %v927 = vpop.permute.xlu0 %926
    %928 = vrot.lane.b32.xlu0 %v594, 64
    %v929 = vpop.permute.xlu0 %928
    %930 = vrot.lane.b32.xlu0 %v595, 64
    %v931 = vpop.permute.xlu0 %930
    %932 = vrot.lane.b32.xlu0 %v596, 64
    %v933 = vpop.permute.xlu0 %932
    %934 = vrot.lane.b32.xlu0 %v597, 64
    %v935 = vpop.permute.xlu0 %934
    %936 = vrot.lane.b32.xlu0 %v598, 64
    %v937 = vpop.permute.xlu0 %936
    %938 = vrot.lane.b32.xlu0 %v599, 64
    %v939 = vpop.permute.xlu0 %938
    %940 = vrot.lane.b32.xlu0 %v600, 64
    %v941 = vpop.permute.xlu0 %940
    %942 = vrot.lane.b32.xlu0 %v601, 64
    %v943 = vpop.permute.xlu0 %942
    %944 = vrot.lane.b32.xlu0 %v602, 64
    %v945 = vpop.permute.xlu0 %944
    %946 = vrot.lane.b32.xlu0 %v603, 64
    %v947 = vpop.permute.xlu0 %946
    %948 = vrot.lane.b32.xlu0 %v604, 64
    %v949 = vpop.permute.xlu0 %948
    %950 = vrot.lane.b32.xlu0 %v605, 64
    %v951 = vpop.permute.xlu0 %950
    %952 = vrot.lane.b32.xlu0 %v606, 64
    %v953 = vpop.permute.xlu0 %952
    %954 = vrot.lane.b32.xlu0 %v607, 64
    %v955 = vpop.permute.xlu0 %954
    %956 = vrot.lane.b32.xlu0 %v608, 64
    %v957 = vpop.permute.xlu0 %956
    %958 = vrot.lane.b32.xlu0 %v609, 64
    %v959 = vpop.permute.xlu0 %958
    %960 = vrot.lane.b32.xlu0 %v610, 64
    %v961 = vpop.permute.xlu0 %960
    %962 = vrot.lane.b32.xlu0 %v611, 64
    %v963 = vpop.permute.xlu0 %962
    %964 = vrot.lane.b32.xlu0 %v612, 64
    %v965 = vpop.permute.xlu0 %964
    %966 = vrot.lane.b32.xlu0 %v613, 64
    %v967 = vpop.permute.xlu0 %966
    %968 = vrot.lane.b32.xlu0 %v614, 64
    %v969 = vpop.permute.xlu0 %968
    %970 = vrot.lane.b32.xlu0 %v615, 64
    %v971 = vpop.permute.xlu0 %970
    %972 = vrot.lane.b32.xlu0 %v616, 64
    %v973 = vpop.permute.xlu0 %972
    %974 = vrot.lane.b32.xlu0 %v617, 64
    %v975 = vpop.permute.xlu0 %974
    %976 = vrot.lane.b32.xlu0 %v618, 64
    %v977 = vpop.permute.xlu0 %976
    %978 = vrot.lane.b32.xlu0 %v619, 64
    %v979 = vpop.permute.xlu0 %978
    %980 = vrot.lane.b32.xlu0 %v620, 64
    %v981 = vpop.permute.xlu0 %980
    %982 = vrot.lane.b32.xlu0 %v621, 64
    %v983 = vpop.permute.xlu0 %982
    %984 = vrot.lane.b32.xlu0 %v622, 64
    %v985 = vpop.permute.xlu0 %984
    %986 = vrot.lane.b32.xlu0 %v623, 64
    %v987 = vpop.permute.xlu0 %986
    %988 = vrot.lane.b32.xlu0 %v624, 64
    %v989 = vpop.permute.xlu0 %988
    %990 = vrot.lane.b32.xlu0 %v625, 64
    %v991 = vpop.permute.xlu0 %990
    %992 = vrot.lane.b32.xlu0 %v626, 64
    %v993 = vpop.permute.xlu0 %992
    %994 = vrot.lane.b32.xlu0 %v627, 64
    %v995 = vpop.permute.xlu0 %994
    %996 = vrot.lane.b32.xlu0 %v628, 64
    %v997 = vpop.permute.xlu0 %996
    %998 = vrot.lane.b32.xlu0 %v629, 64
    %v999 = vpop.permute.xlu0 %998
    %1000 = vrot.lane.b32.xlu0 %v630, 64
    %v1001 = vpop.permute.xlu0 %1000
    %1002 = vrot.lane.b32.xlu0 %v631, 64
    %v1003 = vpop.permute.xlu0 %1002
    %1004 = vrot.lane.b32.xlu0 %v632, 64
    %v1005 = vpop.permute.xlu0 %1004
    %1006 = vrot.lane.b32.xlu0 %v633, 64
    %v1007 = vpop.permute.xlu0 %1006
    %1008 = vrot.lane.b32.xlu0 %v634, 64
    %v1009 = vpop.permute.xlu0 %1008
    %1010 = vrot.lane.b32.xlu0 %v635, 64
    %v1011 = vpop.permute.xlu0 %1010
    %1012 = vrot.lane.b32.xlu0 %v636, 64
    %v1013 = vpop.permute.xlu0 %1012
    %1014 = vrot.lane.b32.xlu0 %v637, 64
    %v1015 = vpop.permute.xlu0 %1014
    %1016 = vrot.lane.b32.xlu0 %v638, 64
    %v1017 = vpop.permute.xlu0 %1016
    %1018 = vrot.lane.b32.xlu0 %v639, 64
    %v1019 = vpop.permute.xlu0 %1018
    %1020 = vrot.lane.b32.xlu0 %v640, 64
    %v1021 = vpop.permute.xlu0 %1020
    %1022 = vrot.lane.b32.xlu0 %v641, 64
    %v1023 = vpop.permute.xlu0 %1022
    %1024 = vrot.lane.b32.xlu0 %v642, 64
    %v1025 = vpop.permute.xlu0 %1024
    %1026 = vrot.lane.b32.xlu0 %v643, 64
    %v1027 = vpop.permute.xlu0 %1026
    %1028 = vrot.lane.b32.xlu0 %v644, 64
    %v1029 = vpop.permute.xlu0 %1028
    %1030 = vrot.lane.b32.xlu0 %v645, 64
    %v1031 = vpop.permute.xlu0 %1030
    %1032 = vrot.lane.b32.xlu0 %v646, 64
    %v1033 = vpop.permute.xlu0 %1032
    %1034 = vrot.lane.b32.xlu0 %v647, 64
    %v1035 = vpop.permute.xlu0 %1034
    %1036 = vrot.lane.b32.xlu0 %v648, 64
    %v1037 = vpop.permute.xlu0 %1036
    %1038 = vrot.lane.b32.xlu0 %v649, 64
    %v1039 = vpop.permute.xlu0 %1038
    %1040 = vrot.lane.b32.xlu0 %v650, 64
    %v1041 = vpop.permute.xlu0 %1040
    %1042 = vrot.lane.b32.xlu0 %v651, 64
    %v1043 = vpop.permute.xlu0 %1042
    %1044 = vrot.lane.b32.xlu0 %v652, 64
    %v1045 = vpop.permute.xlu0 %1044
    %1046 = vrot.lane.b32.xlu0 %v653, 64
    %v1047 = vpop.permute.xlu0 %1046
    %1048 = vrot.lane.b32.xlu0 %v654, 64
    %v1049 = vpop.permute.xlu0 %1048
    %vm1050 = vcmask 261120
    %v1052 = vsel %vm1050, %v880, 0
    %v1055 = vsel %vm1050, %v923, 0
    %v1058 = vsel %vm1050, %v925, 0
    %v1061 = vsel %vm1050, %v927, 0
    %v1064 = vsel %vm1050, %v929, 0
    %v1067 = vsel %vm1050, %v931, 0
    %v1070 = vsel %vm1050, %v933, 0
    %v1073 = vsel %vm1050, %v935, 0
    %v1076 = vsel %vm1050, %v937, 0
    %v1079 = vsel %vm1050, %v939, 0
    %v1082 = vsel %vm1050, %v941, 0
    %v1085 = vsel %vm1050, %v943, 0
    %v1088 = vsel %vm1050, %v945, 0
    %v1091 = vsel %vm1050, %v947, 0
    %v1094 = vsel %vm1050, %v949, 0
    %v1097 = vsel %vm1050, %v951, 0
    %v1100 = vsel %vm1050, %v953, 0
    %v1103 = vsel %vm1050, %v955, 0
    %v1106 = vsel %vm1050, %v957, 0
    %v1109 = vsel %vm1050, %v959, 0
    %v1112 = vsel %vm1050, %v961, 0
    %v1115 = vsel %vm1050, %v963, 0
    %v1118 = vsel %vm1050, %v965, 0
    %v1121 = vsel %vm1050, %v967, 0
    %v1124 = vsel %vm1050, %v969, 0
    %v1127 = vsel %vm1050, %v971, 0
    %v1130 = vsel %vm1050, %v973, 0
    %v1133 = vsel %vm1050, %v975, 0
    %v1136 = vsel %vm1050, %v977, 0
    %v1139 = vsel %vm1050, %v979, 0
    %v1142 = vsel %vm1050, %v981, 0
    %v1145 = vsel %vm1050, %v983, 0
    %v1148 = vsel %vm1050, %v985, 0
    %v1151 = vsel %vm1050, %v987, 0
    %v1154 = vsel %vm1050, %v989, 0
    %v1157 = vsel %vm1050, %v991, 0
    %v1160 = vsel %vm1050, %v993, 0
    %v1163 = vsel %vm1050, %v995, 0
    %v1166 = vsel %vm1050, %v997, 0
    %v1169 = vsel %vm1050, %v999, 0
    %v1172 = vsel %vm1050, %v1001, 0
    %v1175 = vsel %vm1050, %v1003, 0
    %v1178 = vsel %vm1050, %v1005, 0
    %v1181 = vsel %vm1050, %v1007, 0
    %v1184 = vsel %vm1050, %v1009, 0
    %v1187 = vsel %vm1050, %v1011, 0
    %v1190 = vsel %vm1050, %v1013, 0
    %v1193 = vsel %vm1050, %v1015, 0
    %v1196 = vsel %vm1050, %v1017, 0
    %v1199 = vsel %vm1050, %v1019, 0
    %v1202 = vsel %vm1050, %v1021, 0
    %v1205 = vsel %vm1050, %v1023, 0
    %v1208 = vsel %vm1050, %v1025, 0
    %v1211 = vsel %vm1050, %v1027, 0
    %v1214 = vsel %vm1050, %v1029, 0
    %v1217 = vsel %vm1050, %v1031, 0
    %v1220 = vsel %vm1050, %v1033, 0
    %v1223 = vsel %vm1050, %v1035, 0
    %v1226 = vsel %vm1050, %v1037, 0
    %v1229 = vsel %vm1050, %v1039, 0
    %v1232 = vsel %vm1050, %v1041, 0
    %v1235 = vsel %vm1050, %v1043, 0
    %v1238 = vsel %vm1050, %v1045, 0
    %v1241 = vsel %vm1050, %v1047, 0
    %v1244 = vsel %vm1050, %v1049, 0
    %1246 = vmatprep.subr.bf16.mxu0 0
    %1247 = vmatpush1.bf16.xpose.msra.mxu0 %v1055
    %1248 = vmatprep.subr.bf16.mxu0 0
    %1249 = vmatpush1.bf16.xpose.msra.mxu0 %v1058
    %1250 = vmatprep.subr.bf16.mxu0 0
    %1251 = vmatpush1.bf16.xpose.msra.mxu0 %v1061
    %1252 = vmatprep.subr.bf16.mxu0 0
    %1253 = vmatpush1.bf16.xpose.msra.mxu0 %v1064
    %1254 = vmatprep.subr.bf16.mxu0 0
    %1255 = vmatpush1.bf16.xpose.msra.mxu0 %v1067
    %1256 = vmatprep.subr.bf16.mxu0 0
    %1257 = vmatpush1.bf16.xpose.msra.mxu0 %v1070
    %1258 = vmatprep.subr.bf16.mxu0 0
    %1259 = vmatpush1.bf16.xpose.msra.mxu0 %v1073
    %1260 = vmatprep.subr.bf16.mxu0 0
    %1261 = vmatpush1.bf16.xpose.msra.mxu0 %v1076
    %1262 = vmatprep.subr.bf16.mxu0 0
    %1263 = vmatpush1.bf16.xpose.msra.mxu0 %v1079
    %1264 = vmatprep.subr.bf16.mxu0 0
    %1265 = vmatpush1.bf16.xpose.msra.mxu0 %v1082
    %1266 = vmatprep.subr.bf16.mxu0 0
    %1267 = vmatpush1.bf16.xpose.msra.mxu0 %v1085
    %1268 = vmatprep.subr.bf16.mxu0 0
    %1269 = vmatpush1.bf16.xpose.msra.mxu0 %v1088
    %1270 = vmatprep.subr.bf16.mxu0 0
    %1271 = vmatpush1.bf16.xpose.msra.mxu0 %v1091
    %1272 = vmatprep.subr.bf16.mxu0 0
    %1273 = vmatpush1.bf16.xpose.msra.mxu0 %v1094
    %1274 = vmatprep.subr.bf16.mxu0 0
    %1275 = vmatpush1.bf16.xpose.msra.mxu0 %v1097
    %1276 = vmatprep.subr.bf16.mxu0 0
    %1277 = vmatpush1.bf16.xpose.msra.mxu0 %v1100
    %1278 = vmatprep.mubr.bf16.mxu0 0
    %1279 = vmatmul.mubr.bf16.gmra.mrb[0].mxu0 %v1052
    %v1280 = vpop.f32.mrb[0].mxu0
    %v1281 = vadd.f32 %v885, %v1280
    %v1282 = vpop.f32.mrb[0].mxu0
    %v1283 = vadd.f32 %v889, %v1282
    %v1284 = vpop.f32.mrb[0].mxu0
    %v1285 = vpop.f32.mrb[0].mxu0
    %1286 = vdwg.mxu0
    %1287 = vmatprep.subr.bf16.mxu0 0
    %1288 = vmatpush1.bf16.xpose.msra.mxu0 %v1103
    %1289 = vmatprep.subr.bf16.mxu0 0
    %1290 = vmatpush1.bf16.xpose.msra.mxu0 %v1106
    %1291 = vmatprep.subr.bf16.mxu0 0
    %1292 = vmatpush1.bf16.xpose.msra.mxu0 %v1109
    %1293 = vmatprep.subr.bf16.mxu0 0
    %1294 = vmatpush1.bf16.xpose.msra.mxu0 %v1112
    %1295 = vmatprep.subr.bf16.mxu0 0
    %1296 = vmatpush1.bf16.xpose.msra.mxu0 %v1115
    %1297 = vmatprep.subr.bf16.mxu0 0
    %1298 = vmatpush1.bf16.xpose.msra.mxu0 %v1118
    %1299 = vmatprep.subr.bf16.mxu0 0
    %1300 = vmatpush1.bf16.xpose.msra.mxu0 %v1121
    %1301 = vmatprep.subr.bf16.mxu0 0
    %1302 = vmatpush1.bf16.xpose.msra.mxu0 %v1124
    %1303 = vmatprep.subr.bf16.mxu0 0
    %1304 = vmatpush1.bf16.xpose.msra.mxu0 %v1127
    %1305 = vmatprep.subr.bf16.mxu0 0
    %1306 = vmatpush1.bf16.xpose.msra.mxu0 %v1130
    %1307 = vmatprep.subr.bf16.mxu0 0
    %1308 = vmatpush1.bf16.xpose.msra.mxu0 %v1133
    %1309 = vmatprep.subr.bf16.mxu0 0
    %1310 = vmatpush1.bf16.xpose.msra.mxu0 %v1136
    %1311 = vmatprep.subr.bf16.mxu0 0
    %1312 = vmatpush1.bf16.xpose.msra.mxu0 %v1139
    %1313 = vmatprep.subr.bf16.mxu0 0
    %1314 = vmatpush1.bf16.xpose.msra.mxu0 %v1142
    %1315 = vmatprep.subr.bf16.mxu0 0
    %1316 = vmatpush1.bf16.xpose.msra.mxu0 %v1145
    %1317 = vmatprep.subr.bf16.mxu0 0
    %1318 = vmatpush1.bf16.xpose.msra.mxu0 %v1148
    %1319 = vmatprep.mubr.bf16.mxu0 0
    %1320 = vmatmul.mubr.bf16.gmra.mrb[0].mxu0 %v1052
    %v1321 = vpop.f32.mrb[0].mxu0
    %v1322 = vadd.f32 %v893, %v1321
    %v1323 = vpop.f32.mrb[0].mxu0
    %v1324 = vadd.f32 %v897, %v1323
    %v1325 = vpop.f32.mrb[0].mxu0
    %v1326 = vpop.f32.mrb[0].mxu0
    %1327 = vdwg.mxu0
    %1328 = vmatprep.subr.bf16.mxu0 0
    %1329 = vmatpush1.bf16.xpose.msra.mxu0 %v1151
    %1330 = vmatprep.subr.bf16.mxu0 0
    %1331 = vmatpush1.bf16.xpose.msra.mxu0 %v1154
    %1332 = vmatprep.subr.bf16.mxu0 0
    %1333 = vmatpush1.bf16.xpose.msra.mxu0 %v1157
    %1334 = vmatprep.subr.bf16.mxu0 0
    %1335 = vmatpush1.bf16.xpose.msra.mxu0 %v1160
    %1336 = vmatprep.subr.bf16.mxu0 0
    %1337 = vmatpush1.bf16.xpose.msra.mxu0 %v1163
    %1338 = vmatprep.subr.bf16.mxu0 0
    %1339 = vmatpush1.bf16.xpose.msra.mxu0 %v1166
    %1340 = vmatprep.subr.bf16.mxu0 0
    %1341 = vmatpush1.bf16.xpose.msra.mxu0 %v1169
    %1342 = vmatprep.subr.bf16.mxu0 0
    %1343 = vmatpush1.bf16.xpose.msra.mxu0 %v1172
    %1344 = vmatprep.subr.bf16.mxu0 0
    %1345 = vmatpush1.bf16.xpose.msra.mxu0 %v1175
    %1346 = vmatprep.subr.bf16.mxu0 0
    %1347 = vmatpush1.bf16.xpose.msra.mxu0 %v1178
    %1348 = vmatprep.subr.bf16.mxu0 0
    %1349 = vmatpush1.bf16.xpose.msra.mxu0 %v1181
    %1350 = vmatprep.subr.bf16.mxu0 0
    %1351 = vmatpush1.bf16.xpose.msra.mxu0 %v1184
    %1352 = vmatprep.subr.bf16.mxu0 0
    %1353 = vmatpush1.bf16.xpose.msra.mxu0 %v1187
    %1354 = vmatprep.subr.bf16.mxu0 0
    %1355 = vmatpush1.bf16.xpose.msra.mxu0 %v1190
    %1356 = vmatprep.subr.bf16.mxu0 0
    %1357 = vmatpush1.bf16.xpose.msra.mxu0 %v1193
    %1358 = vmatprep.subr.bf16.mxu0 0
    %1359 = vmatpush1.bf16.xpose.msra.mxu0 %v1196
    %1360 = vmatprep.mubr.bf16.mxu0 0
    %1361 = vmatmul.mubr.bf16.gmra.mrb[0].mxu0 %v1052
    %v1362 = vpop.f32.mrb[0].mxu0
    %v1363 = vadd.f32 %v901, %v1362
    %v1364 = vpop.f32.mrb[0].mxu0
    %v1365 = vadd.f32 %v905, %v1364
    %v1366 = vpop.f32.mrb[0].mxu0
    %v1367 = vpop.f32.mrb[0].mxu0
    %1368 = vdwg.mxu0
    %1369 = vmatprep.subr.bf16.mxu0 0
    %1370 = vmatpush1.bf16.xpose.msra.mxu0 %v1199
    %1371 = vmatprep.subr.bf16.mxu0 0
    %1372 = vmatpush1.bf16.xpose.msra.mxu0 %v1202
    %1373 = vmatprep.subr.bf16.mxu0 0
    %1374 = vmatpush1.bf16.xpose.msra.mxu0 %v1205
    %1375 = vmatprep.subr.bf16.mxu0 0
    %1376 = vmatpush1.bf16.xpose.msra.mxu0 %v1208
    %1377 = vmatprep.subr.bf16.mxu0 0
    %1378 = vmatpush1.bf16.xpose.msra.mxu0 %v1211
    %1379 = vmatprep.subr.bf16.mxu0 0
    %1380 = vmatpush1.bf16.xpose.msra.mxu0 %v1214
    %1381 = vmatprep.subr.bf16.mxu0 0
    %1382 = vmatpush1.bf16.xpose.msra.mxu0 %v1217
    %1383 = vmatprep.subr.bf16.mxu0 0
    %1384 = vmatpush1.bf16.xpose.msra.mxu0 %v1220
    %1385 = vmatprep.subr.bf16.mxu0 0
    %1386 = vmatpush1.bf16.xpose.msra.mxu0 %v1223
    %1387 = vmatprep.subr.bf16.mxu0 0
    %1388 = vmatpush1.bf16.xpose.msra.mxu0 %v1226
    %1389 = vmatprep.subr.bf16.mxu0 0
    %1390 = vmatpush1.bf16.xpose.msra.mxu0 %v1229
    %1391 = vmatprep.subr.bf16.mxu0 0
    %1392 = vmatpush1.bf16.xpose.msra.mxu0 %v1232
    %1393 = vmatprep.subr.bf16.mxu0 0
    %1394 = vmatpush1.bf16.xpose.msra.mxu0 %v1235
    %1395 = vmatprep.subr.bf16.mxu0 0
    %1396 = vmatpush1.bf16.xpose.msra.mxu0 %v1238
    %1397 = vmatprep.subr.bf16.mxu0 0
    %1398 = vmatpush1.bf16.xpose.msra.mxu0 %v1241
    %1399 = vmatprep.subr.bf16.mxu0 0
    %1400 = vmatpush1.bf16.xpose.msra.mxu0 %v1244
    %1401 = vmatprep.mubr.bf16.mxu0 0
    %1402 = vmatmul.mubr.bf16.gmra.mrb[0].mxu0 %v1052
    %v1403 = vpop.f32.mrb[0].mxu0
    %v1404 = vadd.f32 %v909, %v1403
    %v1405 = vpop.f32.mrb[0].mxu0
    %v1406 = vadd.f32 %v913, %v1405
    %v1407 = vpop.f32.mrb[0].mxu0
    %v1408 = vpop.f32.mrb[0].mxu0
    %1409 = vdwg.mxu0
    %v1410 = vtanh.pop %v1281
    %v1411 = vtanh.pop %v1283
    %v1412 = vtanh.pop %v1322
    %v1413 = vtanh.pop %v1324
    %v1414 = vtanh.pop %v1363
    %v1415 = vtanh.pop %v1365
    %v1416 = vtanh.pop %v1404
    %v1417 = vtanh.pop %v1406
    %v1418 = vpack.c.bf16 %v1410, %v1410
    %v1419 = vpack.c.bf16 %v1411, %v1411
    %v1420 = vpack.c.bf16 %v1412, %v1412
    %v1421 = vpack.c.bf16 %v1413, %v1413
    %v1422 = vpack.c.bf16 %v1414, %v1414
    %v1423 = vpack.c.bf16 %v1415, %v1415
    %v1424 = vpack.c.bf16 %v1416, %v1416
    %v1425 = vpack.c.bf16 %v1417, %v1417
    %1426 = vrot.lane.b32.xlu0 %v591, 96
    %v1427 = vpop.permute.xlu0 %1426
    %1428 = vrot.lane.b32.xlu0 %v592, 96
    %v1429 = vpop.permute.xlu0 %1428
    %1430 = vrot.lane.b32.xlu0 %v593, 96
    %v1431 = vpop.permute.xlu0 %1430
    %1432 = vrot.lane.b32.xlu0 %v594, 96
    %v1433 = vpop.permute.xlu0 %1432
    %1434 = vrot.lane.b32.xlu0 %v595, 96
    %v1435 = vpop.permute.xlu0 %1434
    %1436 = vrot.lane.b32.xlu0 %v596, 96
    %v1437 = vpop.permute.xlu0 %1436
    %1438 = vrot.lane.b32.xlu0 %v597, 96
    %v1439 = vpop.permute.xlu0 %1438
    %1440 = vrot.lane.b32.xlu0 %v598, 96
    %v1441 = vpop.permute.xlu0 %1440
    %1442 = vrot.lane.b32.xlu0 %v599, 96
    %v1443 = vpop.permute.xlu0 %1442
    %1444 = vrot.lane.b32.xlu0 %v600, 96
    %v1445 = vpop.permute.xlu0 %1444
    %1446 = vrot.lane.b32.xlu0 %v601, 96
    %v1447 = vpop.permute.xlu0 %1446
    %1448 = vrot.lane.b32.xlu0 %v602, 96
    %v1449 = vpop.permute.xlu0 %1448
    %1450 = vrot.lane.b32.xlu0 %v603, 96
    %v1451 = vpop.permute.xlu0 %1450
    %1452 = vrot.lane.b32.xlu0 %v604, 96
    %v1453 = vpop.permute.xlu0 %1452
    %1454 = vrot.lane.b32.xlu0 %v605, 96
    %v1455 = vpop.permute.xlu0 %1454
    %1456 = vrot.lane.b32.xlu0 %v606, 96
    %v1457 = vpop.permute.xlu0 %1456
    %1458 = vrot.lane.b32.xlu0 %v607, 96
    %v1459 = vpop.permute.xlu0 %1458
    %1460 = vrot.lane.b32.xlu0 %v608, 96
    %v1461 = vpop.permute.xlu0 %1460
    %1462 = vrot.lane.b32.xlu0 %v609, 96
    %v1463 = vpop.permute.xlu0 %1462
    %1464 = vrot.lane.b32.xlu0 %v610, 96
    %v1465 = vpop.permute.xlu0 %1464
    %1466 = vrot.lane.b32.xlu0 %v611, 96
    %v1467 = vpop.permute.xlu0 %1466
    %1468 = vrot.lane.b32.xlu0 %v612, 96
    %v1469 = vpop.permute.xlu0 %1468
    %1470 = vrot.lane.b32.xlu0 %v613, 96
    %v1471 = vpop.permute.xlu0 %1470
    %1472 = vrot.lane.b32.xlu0 %v614, 96
    %v1473 = vpop.permute.xlu0 %1472
    %1474 = vrot.lane.b32.xlu0 %v615, 96
    %v1475 = vpop.permute.xlu0 %1474
    %1476 = vrot.lane.b32.xlu0 %v616, 96
    %v1477 = vpop.permute.xlu0 %1476
    %1478 = vrot.lane.b32.xlu0 %v617, 96
    %v1479 = vpop.permute.xlu0 %1478
    %1480 = vrot.lane.b32.xlu0 %v618, 96
    %v1481 = vpop.permute.xlu0 %1480
    %1482 = vrot.lane.b32.xlu0 %v619, 96
    %v1483 = vpop.permute.xlu0 %1482
    %1484 = vrot.lane.b32.xlu0 %v620, 96
    %v1485 = vpop.permute.xlu0 %1484
    %1486 = vrot.lane.b32.xlu0 %v621, 96
    %v1487 = vpop.permute.xlu0 %1486
    %1488 = vrot.lane.b32.xlu0 %v622, 96
    %v1489 = vpop.permute.xlu0 %1488
    %1490 = vrot.lane.b32.xlu0 %v623, 96
    %v1491 = vpop.permute.xlu0 %1490
    %1492 = vrot.lane.b32.xlu0 %v624, 96
    %v1493 = vpop.permute.xlu0 %1492
    %1494 = vrot.lane.b32.xlu0 %v625, 96
    %v1495 = vpop.permute.xlu0 %1494
    %1496 = vrot.lane.b32.xlu0 %v626, 96
    %v1497 = vpop.permute.xlu0 %1496
    %1498 = vrot.lane.b32.xlu0 %v627, 96
    %v1499 = vpop.permute.xlu0 %1498
    %1500 = vrot.lane.b32.xlu0 %v628, 96
    %v1501 = vpop.permute.xlu0 %1500
    %1502 = vrot.lane.b32.xlu0 %v629, 96
    %v1503 = vpop.permute.xlu0 %1502
    %1504 = vrot.lane.b32.xlu0 %v630, 96
    %v1505 = vpop.permute.xlu0 %1504
    %1506 = vrot.lane.b32.xlu0 %v631, 96
    %v1507 = vpop.permute.xlu0 %1506
    %1508 = vrot.lane.b32.xlu0 %v632, 96
    %v1509 = vpop.permute.xlu0 %1508
    %1510 = vrot.lane.b32.xlu0 %v633, 96
    %v1511 = vpop.permute.xlu0 %1510
    %1512 = vrot.lane.b32.xlu0 %v634, 96
    %v1513 = vpop.permute.xlu0 %1512
    %1514 = vrot.lane.b32.xlu0 %v635, 96
    %v1515 = vpop.permute.xlu0 %1514
    %1516 = vrot.lane.b32.xlu0 %v636, 96
    %v1517 = vpop.permute.xlu0 %1516
    %1518 = vrot.lane.b32.xlu0 %v637, 96
    %v1519 = vpop.permute.xlu0 %1518
    %1520 = vrot.lane.b32.xlu0 %v638, 96
    %v1521 = vpop.permute.xlu0 %1520
    %1522 = vrot.lane.b32.xlu0 %v639, 96
    %v1523 = vpop.permute.xlu0 %1522
    %1524 = vrot.lane.b32.xlu0 %v640, 96
    %v1525 = vpop.permute.xlu0 %1524
    %1526 = vrot.lane.b32.xlu0 %v641, 96
    %v1527 = vpop.permute.xlu0 %1526
    %1528 = vrot.lane.b32.xlu0 %v642, 96
    %v1529 = vpop.permute.xlu0 %1528
    %1530 = vrot.lane.b32.xlu0 %v643, 96
    %v1531 = vpop.permute.xlu0 %1530
    %1532 = vrot.lane.b32.xlu0 %v644, 96
    %v1533 = vpop.permute.xlu0 %1532
    %1534 = vrot.lane.b32.xlu0 %v645, 96
    %v1535 = vpop.permute.xlu0 %1534
    %1536 = vrot.lane.b32.xlu0 %v646, 96
    %v1537 = vpop.permute.xlu0 %1536
    %1538 = vrot.lane.b32.xlu0 %v647, 96
    %v1539 = vpop.permute.xlu0 %1538
    %1540 = vrot.lane.b32.xlu0 %v648, 96
    %v1541 = vpop.permute.xlu0 %1540
    %1542 = vrot.lane.b32.xlu0 %v649, 96
    %v1543 = vpop.permute.xlu0 %1542
    %1544 = vrot.lane.b32.xlu0 %v650, 96
    %v1545 = vpop.permute.xlu0 %1544
    %1546 = vrot.lane.b32.xlu0 %v651, 96
    %v1547 = vpop.permute.xlu0 %1546
    %1548 = vrot.lane.b32.xlu0 %v652, 96
    %v1549 = vpop.permute.xlu0 %1548
    %1550 = vrot.lane.b32.xlu0 %v653, 96
    %v1551 = vpop.permute.xlu0 %1550
    %1552 = vrot.lane.b32.xlu0 %v654, 96
    %v1553 = vpop.permute.xlu0 %1552
    %1618 = vrot.lane.b32.xlu0 %v333, 96
    %v1619 = vpop.permute.xlu0 %1618
    %1621 = vmatprep.subr.bf16.mxu0 0
    %1622 = vmatpush1.bf16.msra.mxu0 %v1427
    %1623 = vmatprep.subr.bf16.mxu0 0
    %1624 = vmatpush1.bf16.msra.mxu0 %v1429
    %1625 = vmatprep.subr.bf16.mxu0 0
    %1626 = vmatpush1.bf16.msra.mxu0 %v1431
    %1627 = vmatprep.subr.bf16.mxu0 0
    %1628 = vmatpush1.bf16.msra.mxu0 %v1433
    %1629 = vmatprep.subr.bf16.mxu0 0
    %1630 = vmatpush1.bf16.msra.mxu0 %v1435
    %1631 = vmatprep.subr.bf16.mxu0 0
    %1632 = vmatpush1.bf16.msra.mxu0 %v1437
    %1633 = vmatprep.subr.bf16.mxu0 0
    %1634 = vmatpush1.bf16.msra.mxu0 %v1439
    %1635 = vmatprep.subr.bf16.mxu0 0
    %1636 = vmatpush1.bf16.msra.mxu0 %v1441
    %1637 = vmatprep.subr.bf16.mxu0 0
    %1638 = vmatpush1.bf16.msra.mxu0 %v1443
    %1639 = vmatprep.subr.bf16.mxu0 0
    %1640 = vmatpush1.bf16.msra.mxu0 %v1445
    %1641 = vmatprep.subr.bf16.mxu0 0
    %1642 = vmatpush1.bf16.msra.mxu0 %v1447
    %1643 = vmatprep.subr.bf16.mxu0 0
    %1644 = vmatpush1.bf16.msra.mxu0 %v1449
    %1645 = vmatprep.subr.bf16.mxu0 0
    %1646 = vmatpush1.bf16.msra.mxu0 %v1451
    %1647 = vmatprep.subr.bf16.mxu0 0
    %1648 = vmatpush1.bf16.msra.mxu0 %v1453
    %1649 = vmatprep.subr.bf16.mxu0 0
    %1650 = vmatpush1.bf16.msra.mxu0 %v1455
    %1651 = vmatprep.subr.bf16.mxu0 0
    %1652 = vmatpush1.bf16.msra.mxu0 %v1457
    %1653 = vmatprep.mubr.bf16.mxu0 %v1419
    %1654 = vmatmul.mubr.bf16.gmra.mrb[0].mxu0 %v1418
    %v1655 = vpop.f32.mrb[0].mxu0
    %v1656 = vadd.f32 %v1619, %v1655
    %v1657 = vpop.f32.mrb[0].mxu0
    %v1658 = vpop.f32.mrb[0].mxu0
    %v1659 = vpop.f32.mrb[0].mxu0
    %1660 = vdwg.mxu0
    %1661 = vmatprep.subr.bf16.mxu0 0
    %1662 = vmatpush1.bf16.msra.mxu0 %v1459
    %1663 = vmatprep.subr.bf16.mxu0 0
    %1664 = vmatpush1.bf16.msra.mxu0 %v1461
    %1665 = vmatprep.subr.bf16.mxu0 0
    %1666 = vmatpush1.bf16.msra.mxu0 %v1463
    %1667 = vmatprep.subr.bf16.mxu0 0
    %1668 = vmatpush1.bf16.msra.mxu0 %v1465
    %1669 = vmatprep.subr.bf16.mxu0 0
    %1670 = vmatpush1.bf16.msra.mxu0 %v1467
    %1671 = vmatprep.subr.bf16.mxu0 0
    %1672 = vmatpush1.bf16.msra.mxu0 %v1469
    %1673 = vmatprep.subr.bf16.mxu0 0
    %1674 = vmatpush1.bf16.msra.mxu0 %v1471
    %1675 = vmatprep.subr.bf16.mxu0 0
    %1676 = vmatpush1.bf16.msra.mxu0 %v1473
    %1677 = vmatprep.subr.bf16.mxu0 0
    %1678 = vmatpush1.bf16.msra.mxu0 %v1475
    %1679 = vmatprep.subr.bf16.mxu0 0
    %1680 = vmatpush1.bf16.msra.mxu0 %v1477
    %1681 = vmatprep.subr.bf16.mxu0 0
    %1682 = vmatpush1.bf16.msra.mxu0 %v1479
    %1683 = vmatprep.subr.bf16.mxu0 0
    %1684 = vmatpush1.bf16.msra.mxu0 %v1481
    %1685 = vmatprep.subr.bf16.mxu0 0
    %1686 = vmatpush1.bf16.msra.mxu0 %v1483
    %1687 = vmatprep.subr.bf16.mxu0 0
    %1688 = vmatpush1.bf16.msra.mxu0 %v1485
    %1689 = vmatprep.subr.bf16.mxu0 0
    %1690 = vmatpush1.bf16.msra.mxu0 %v1487
    %1691 = vmatprep.subr.bf16.mxu0 0
    %1692 = vmatpush1.bf16.msra.mxu0 %v1489
    %1693 = vmatprep.mubr.bf16.mxu0 %v1421
    %1694 = vmatmul.mubr.bf16.gmra.mrb[0].mxu0 %v1420
    %v1695 = vpop.f32.mrb[0].mxu0
    %v1696 = vadd.f32 %v1656, %v1695
    %v1697 = vpop.f32.mrb[0].mxu0
    %v1698 = vpop.f32.mrb[0].mxu0
    %v1699 = vpop.f32.mrb[0].mxu0
    %1700 = vdwg.mxu0
    %1701 = vmatprep.subr.bf16.mxu0 0
    %1702 = vmatpush1.bf16.msra.mxu0 %v1491
    %1703 = vmatprep.subr.bf16.mxu0 0
    %1704 = vmatpush1.bf16.msra.mxu0 %v1493
    %1705 = vmatprep.subr.bf16.mxu0 0
    %1706 = vmatpush1.bf16.msra.mxu0 %v1495
    %1707 = vmatprep.subr.bf16.mxu0 0
    %1708 = vmatpush1.bf16.msra.mxu0 %v1497
    %1709 = vmatprep.subr.bf16.mxu0 0
    %1710 = vmatpush1.bf16.msra.mxu0 %v1499
    %1711 = vmatprep.subr.bf16.mxu0 0
    %1712 = vmatpush1.bf16.msra.mxu0 %v1501
    %1713 = vmatprep.subr.bf16.mxu0 0
    %1714 = vmatpush1.bf16.msra.mxu0 %v1503
    %1715 = vmatprep.subr.bf16.mxu0 0
    %1716 = vmatpush1.bf16.msra.mxu0 %v1505
    %1717 = vmatprep.subr.bf16.mxu0 0
    %1718 = vmatpush1.bf16.msra.mxu0 %v1507
    %1719 = vmatprep.subr.bf16.mxu0 0
    %1720 = vmatpush1.bf16.msra.mxu0 %v1509
    %1721 = vmatprep.subr.bf16.mxu0 0
    %1722 = vmatpush1.bf16.msra.mxu0 %v1511
    %1723 = vmatprep.subr.bf16.mxu0 0
    %1724 = vmatpush1.bf16.msra.mxu0 %v1513
    %1725 = vmatprep.subr.bf16.mxu0 0
    %1726 = vmatpush1.bf16.msra.mxu0 %v1515
    %1727 = vmatprep.subr.bf16.mxu0 0
    %1728 = vmatpush1.bf16.msra.mxu0 %v1517
    %1729 = vmatprep.subr.bf16.mxu0 0
    %1730 = vmatpush1.bf16.msra.mxu0 %v1519
    %1731 = vmatprep.subr.bf16.mxu0 0
    %1732 = vmatpush1.bf16.msra.mxu0 %v1521
    %1733 = vmatprep.mubr.bf16.mxu0 %v1423
    %1734 = vmatmul.mubr.bf16.gmra.mrb[0].mxu0 %v1422
    %v1735 = vpop.f32.mrb[0].mxu0
    %v1736 = vadd.f32 %v1696, %v1735
    %v1737 = vpop.f32.mrb[0].mxu0
    %v1738 = vpop.f32.mrb[0].mxu0
    %v1739 = vpop.f32.mrb[0].mxu0
    %1740 = vdwg.mxu0
    %1741 = vmatprep.subr.bf16.mxu0 0
    %1742 = vmatpush1.bf16.msra.mxu0 %v1523
    %1743 = vmatprep.subr.bf16.mxu0 0
    %1744 = vmatpush1.bf16.msra.mxu0 %v1525
    %1745 = vmatprep.subr.bf16.mxu0 0
    %1746 = vmatpush1.bf16.msra.mxu0 %v1527
    %1747 = vmatprep.subr.bf16.mxu0 0
    %1748 = vmatpush1.bf16.msra.mxu0 %v1529
    %1749 = vmatprep.subr.bf16.mxu0 0
    %1750 = vmatpush1.bf16.msra.mxu0 %v1531
    %1751 = vmatprep.subr.bf16.mxu0 0
    %1752 = vmatpush1.bf16.msra.mxu0 %v1533
    %1753 = vmatprep.subr.bf16.mxu0 0
    %1754 = vmatpush1.bf16.msra.mxu0 %v1535
    %1755 = vmatprep.subr.bf16.mxu0 0
    %1756 = vmatpush1.bf16.msra.mxu0 %v1537
    %1757 = vmatprep.subr.bf16.mxu0 0
    %1758 = vmatpush1.bf16.msra.mxu0 %v1539
    %1759 = vmatprep.subr.bf16.mxu0 0
    %1760 = vmatpush1.bf16.msra.mxu0 %v1541
    %1761 = vmatprep.subr.bf16.mxu0 0
    %1762 = vmatpush1.bf16.msra.mxu0 %v1543
    %1763 = vmatprep.subr.bf16.mxu0 0
    %1764 = vmatpush1.bf16.msra.mxu0 %v1545
    %1765 = vmatprep.subr.bf16.mxu0 0
    %1766 = vmatpush1.bf16.msra.mxu0 %v1547
    %1767 = vmatprep.subr.bf16.mxu0 0
    %1768 = vmatpush1.bf16.msra.mxu0 %v1549
    %1769 = vmatprep.subr.bf16.mxu0 0
    %1770 = vmatpush1.bf16.msra.mxu0 %v1551
    %1771 = vmatprep.subr.bf16.mxu0 0
    %1772 = vmatpush1.bf16.msra.mxu0 %v1553
    %1773 = vmatprep.mubr.bf16.mxu0 %v1425
    %1774 = vmatmul.mubr.bf16.gmra.mrb[0].mxu0 %v1424
    %v1775 = vpop.f32.mrb[0].mxu0
    %v1776 = vadd.f32 %v1736, %v1775
    %v1777 = vpop.f32.mrb[0].mxu0
    %v1778 = vpop.f32.mrb[0].mxu0
    %v1779 = vpop.f32.mrb[0].mxu0
    %1780 = vdwg.mxu0
    %v1781 = vtanh.pop %v1776
    %1782 = vst [vmem:[#allocation2] sm:$0x33] %v27
    %1783 = vst [vmem:[#allocation2 + $0x8] sm:$0x33] %v34
    %1784 = vst [vmem:[#allocation2 + $0x10] sm:$0x33] %v44
    %1785 = vst [vmem:[#allocation2 + $0x18] sm:$0x33] %v51
    %v1794 = vcombine.low %v1410, %v1411
    %v1795 = vcombine.low %v1412, %v1413
    %v1796 = vcombine.low %v1414, %v1415
    %v1797 = vcombine.low %v1416, %v1417
    %v1798 = vrot.slane %v1794, 6
    %v1799 = vrot.slane %v1795, 6
    %v1800 = vrot.slane %v1796, 6
    %v1801 = vrot.slane %v1797, 6
    %1806 = vst [vmem:[#allocation2] sm:$0xcc] %v1798
    %1807 = vst [vmem:[#allocation2 + $0x8] sm:$0xcc] %v1799
    %1808 = vst [vmem:[#allocation2 + $0x10] sm:$0xcc] %v1800
    %1809 = vst [vmem:[#allocation2 + $0x18] sm:$0xcc] %v1801
    %v1810 = vld [vmem:[#allocation2] sm:$0xff]
    %v1811 = vld [vmem:[#allocation2 + $0x8] sm:$0xff]
    %v1812 = vld [vmem:[#allocation2 + $0x10] sm:$0xff]
    %v1813 = vld [vmem:[#allocation2 + $0x18] sm:$0xff]
    %v1818 = vcombine.high %v1810, %v1810
    %v1819 = vcombine.high %v1811, %v1811
    %v1820 = vcombine.high %v1812, %v1812
    %v1821 = vcombine.high %v1813, %v1813
    %v1826 = vpack.c.bf16 %v1810, %v1810
    %v1827 = vpack.c.bf16 %v1818, %v1818
    %v1828 = vpack.c.bf16 %v1811, %v1811
    %v1829 = vpack.c.bf16 %v1819, %v1819
    %v1830 = vpack.c.bf16 %v1812, %v1812
    %v1831 = vpack.c.bf16 %v1820, %v1820
    %v1832 = vpack.c.bf16 %v1813, %v1813
    %v1833 = vpack.c.bf16 %v1821, %v1821
    %v1835 = vlaneseq
    %v1836 = vshrl.u32 %v1835, 7
    %v1837 = vsub.s32 0, %v1836
    %v1838 = vrot.slane %v327, %v1837
    %v1968 = vunpack.c.l.b16 %v70
    %v1969 = vunpack.c.l.b16 %v71
    %v1970 = vunpack.c.l.b16 %v72
    %v1971 = vunpack.c.l.b16 %v73
    %v1972 = vunpack.c.l.b16 %v74
    %v1973 = vunpack.c.l.b16 %v75
    %v1974 = vunpack.c.l.b16 %v76
    %v1975 = vunpack.c.l.b16 %v77
    %v1976 = vunpack.c.l.b16 %v78
    %v1977 = vunpack.c.l.b16 %v79
    %v1978 = vunpack.c.l.b16 %v80
    %v1979 = vunpack.c.l.b16 %v81
    %v1980 = vunpack.c.l.b16 %v82
    %v1981 = vunpack.c.l.b16 %v83
    %v1982 = vunpack.c.l.b16 %v84
    %v1983 = vunpack.c.l.b16 %v85
    %v1984 = vunpack.c.l.b16 %v86
    %v1985 = vunpack.c.l.b16 %v87
    %v1986 = vunpack.c.l.b16 %v88
    %v1987 = vunpack.c.l.b16 %v89
    %v1988 = vunpack.c.l.b16 %v90
    %v1989 = vunpack.c.l.b16 %v91
    %v1990 = vunpack.c.l.b16 %v92
    %v1991 = vunpack.c.l.b16 %v93
    %v1992 = vunpack.c.l.b16 %v94
    %v1993 = vunpack.c.l.b16 %v95
    %v1994 = vunpack.c.l.b16 %v96
    %v1995 = vunpack.c.l.b16 %v97
    %v1996 = vunpack.c.l.b16 %v98
    %v1997 = vunpack.c.l.b16 %v99
    %v1998 = vunpack.c.l.b16 %v100
    %v1999 = vunpack.c.l.b16 %v101
    %v2000 = vunpack.c.l.b16 %v102
    %v2001 = vunpack.c.l.b16 %v103
    %v2002 = vunpack.c.l.b16 %v104
    %v2003 = vunpack.c.l.b16 %v105
    %v2004 = vunpack.c.l.b16 %v106
    %v2005 = vunpack.c.l.b16 %v107
    %v2006 = vunpack.c.l.b16 %v108
    %v2007 = vunpack.c.l.b16 %v109
    %v2008 = vunpack.c.l.b16 %v110
    %v2009 = vunpack.c.l.b16 %v111
    %v2010 = vunpack.c.l.b16 %v112
    %v2011 = vunpack.c.l.b16 %v113
    %v2012 = vunpack.c.l.b16 %v114
    %v2013 = vunpack.c.l.b16 %v115
    %v2014 = vunpack.c.l.b16 %v116
    %v2015 = vunpack.c.l.b16 %v117
    %v2016 = vunpack.c.l.b16 %v118
    %v2017 = vunpack.c.l.b16 %v119
    %v2018 = vunpack.c.l.b16 %v120
    %v2019 = vunpack.c.l.b16 %v121
    %v2020 = vunpack.c.l.b16 %v122
    %v2021 = vunpack.c.l.b16 %v123
    %v2022 = vunpack.c.l.b16 %v124
    %v2023 = vunpack.c.l.b16 %v125
    %v2024 = vunpack.c.l.b16 %v126
    %v2025 = vunpack.c.l.b16 %v127
    %v2026 = vunpack.c.l.b16 %v128
    %v2027 = vunpack.c.l.b16 %v129
    %v2028 = vunpack.c.l.b16 %v130
    %v2029 = vunpack.c.l.b16 %v131
    %v2030 = vunpack.c.l.b16 %v132
    %v2031 = vunpack.c.l.b16 %v133
    %v2032 = vunpack.c.l.b16 %v134
    %v2033 = vunpack.c.l.b16 %v135
    %v2034 = vunpack.c.l.b16 %v136
    %v2035 = vunpack.c.l.b16 %v137
    %v2036 = vunpack.c.l.b16 %v138
    %v2037 = vunpack.c.l.b16 %v139
    %v2038 = vunpack.c.l.b16 %v140
    %v2039 = vunpack.c.l.b16 %v141
    %v2040 = vunpack.c.l.b16 %v142
    %v2041 = vunpack.c.l.b16 %v143
    %v2042 = vunpack.c.l.b16 %v144
    %v2043 = vunpack.c.l.b16 %v145
    %v2044 = vunpack.c.l.b16 %v146
    %v2045 = vunpack.c.l.b16 %v147
    %v2046 = vunpack.c.l.b16 %v148
    %v2047 = vunpack.c.l.b16 %v149
    %v2048 = vunpack.c.l.b16 %v150
    %v2049 = vunpack.c.l.b16 %v151
    %v2050 = vunpack.c.l.b16 %v152
    %v2051 = vunpack.c.l.b16 %v153
    %v2052 = vunpack.c.l.b16 %v154
    %v2053 = vunpack.c.l.b16 %v155
    %v2054 = vunpack.c.l.b16 %v156
    %v2055 = vunpack.c.l.b16 %v157
    %v2056 = vunpack.c.l.b16 %v158
    %v2057 = vunpack.c.l.b16 %v159
    %v2058 = vunpack.c.l.b16 %v160
    %v2059 = vunpack.c.l.b16 %v161
    %v2060 = vunpack.c.l.b16 %v162
    %v2061 = vunpack.c.l.b16 %v163
    %v2062 = vunpack.c.l.b16 %v164
    %v2063 = vunpack.c.l.b16 %v165
    %v2064 = vunpack.c.l.b16 %v166
    %v2065 = vunpack.c.l.b16 %v167
    %v2066 = vunpack.c.l.b16 %v168
    %v2067 = vunpack.c.l.b16 %v169
    %v2068 = vunpack.c.l.b16 %v170
    %v2069 = vunpack.c.l.b16 %v171
    %v2070 = vunpack.c.l.b16 %v172
    %v2071 = vunpack.c.l.b16 %v173
    %v2072 = vunpack.c.l.b16 %v174
    %v2073 = vunpack.c.l.b16 %v175
    %v2074 = vunpack.c.l.b16 %v176
    %v2075 = vunpack.c.l.b16 %v177
    %v2076 = vunpack.c.l.b16 %v178
    %v2077 = vunpack.c.l.b16 %v179
    %v2078 = vunpack.c.l.b16 %v180
    %v2079 = vunpack.c.l.b16 %v181
    %v2080 = vunpack.c.l.b16 %v182
    %v2081 = vunpack.c.l.b16 %v183
    %v2082 = vunpack.c.l.b16 %v184
    %v2083 = vunpack.c.l.b16 %v185
    %v2084 = vunpack.c.l.b16 %v186
    %v2085 = vunpack.c.l.b16 %v187
    %v2086 = vunpack.c.l.b16 %v188
    %v2087 = vunpack.c.l.b16 %v189
    %v2088 = vunpack.c.l.b16 %v190
    %v2089 = vunpack.c.l.b16 %v191
    %v2090 = vunpack.c.l.b16 %v192
    %v2091 = vunpack.c.l.b16 %v193
    %v2092 = vunpack.c.l.b16 %v194
    %v2093 = vunpack.c.l.b16 %v195
    %v2094 = vunpack.c.l.b16 %v196
    %v2095 = vunpack.c.l.b16 %v197
    %v2096 = vpack.c.b16 %v1969, %v1968
    %v2097 = vpack.c.b16 %v1971, %v1970
    %v2098 = vpack.c.b16 %v1973, %v1972
    %v2099 = vpack.c.b16 %v1975, %v1974
    %v2100 = vpack.c.b16 %v1977, %v1976
    %v2101 = vpack.c.b16 %v1979, %v1978
    %v2102 = vpack.c.b16 %v1981, %v1980
    %v2103 = vpack.c.b16 %v1983, %v1982
    %v2104 = vpack.c.b16 %v1985, %v1984
    %v2105 = vpack.c.b16 %v1987, %v1986
    %v2106 = vpack.c.b16 %v1989, %v1988
    %v2107 = vpack.c.b16 %v1991, %v1990
    %v2108 = vpack.c.b16 %v1993, %v1992
    %v2109 = vpack.c.b16 %v1995, %v1994
    %v2110 = vpack.c.b16 %v1997, %v1996
    %v2111 = vpack.c.b16 %v1999, %v1998
    %v2112 = vpack.c.b16 %v2001, %v2000
    %v2113 = vpack.c.b16 %v2003, %v2002
    %v2114 = vpack.c.b16 %v2005, %v2004
    %v2115 = vpack.c.b16 %v2007, %v2006
    %v2116 = vpack.c.b16 %v2009, %v2008
    %v2117 = vpack.c.b16 %v2011, %v2010
    %v2118 = vpack.c.b16 %v2013, %v2012
    %v2119 = vpack.c.b16 %v2015, %v2014
    %v2120 = vpack.c.b16 %v2017, %v2016
    %v2121 = vpack.c.b16 %v2019, %v2018
    %v2122 = vpack.c.b16 %v2021, %v2020
    %v2123 = vpack.c.b16 %v2023, %v2022
    %v2124 = vpack.c.b16 %v2025, %v2024
    %v2125 = vpack.c.b16 %v2027, %v2026
    %v2126 = vpack.c.b16 %v2029, %v2028
    %v2127 = vpack.c.b16 %v2031, %v2030
    %v2128 = vpack.c.b16 %v2033, %v2032
    %v2129 = vpack.c.b16 %v2035, %v2034
    %v2130 = vpack.c.b16 %v2037, %v2036
    %v2131 = vpack.c.b16 %v2039, %v2038
    %v2132 = vpack.c.b16 %v2041, %v2040
    %v2133 = vpack.c.b16 %v2043, %v2042
    %v2134 = vpack.c.b16 %v2045, %v2044
    %v2135 = vpack.c.b16 %v2047, %v2046
    %v2136 = vpack.c.b16 %v2049, %v2048
    %v2137 = vpack.c.b16 %v2051, %v2050
    %v2138 = vpack.c.b16 %v2053, %v2052
    %v2139 = vpack.c.b16 %v2055, %v2054
    %v2140 = vpack.c.b16 %v2057, %v2056
    %v2141 = vpack.c.b16 %v2059, %v2058
    %v2142 = vpack.c.b16 %v2061, %v2060
    %v2143 = vpack.c.b16 %v2063, %v2062
    %v2144 = vpack.c.b16 %v2065, %v2064
    %v2145 = vpack.c.b16 %v2067, %v2066
    %v2146 = vpack.c.b16 %v2069, %v2068
    %v2147 = vpack.c.b16 %v2071, %v2070
    %v2148 = vpack.c.b16 %v2073, %v2072
    %v2149 = vpack.c.b16 %v2075, %v2074
    %v2150 = vpack.c.b16 %v2077, %v2076
    %v2151 = vpack.c.b16 %v2079, %v2078
    %v2152 = vpack.c.b16 %v2081, %v2080
    %v2153 = vpack.c.b16 %v2083, %v2082
    %v2154 = vpack.c.b16 %v2085, %v2084
    %v2155 = vpack.c.b16 %v2087, %v2086
    %v2156 = vpack.c.b16 %v2089, %v2088
    %v2157 = vpack.c.b16 %v2091, %v2090
    %v2158 = vpack.c.b16 %v2093, %v2092
    %v2159 = vpack.c.b16 %v2095, %v2094
    %2224 = vmatprep.subr.bf16.mxu0 0
    %2225 = vmatpush1.bf16.msra.mxu0 %v2096
    %2226 = vmatprep.subr.bf16.mxu0 0
    %2227 = vmatpush1.bf16.msra.mxu0 %v2097
    %2228 = vmatprep.subr.bf16.mxu0 0
    %2229 = vmatpush1.bf16.msra.mxu0 %v2098
    %2230 = vmatprep.subr.bf16.mxu0 0
    %2231 = vmatpush1.bf16.msra.mxu0 %v2099
    %2232 = vmatprep.subr.bf16.mxu0 0
    %2233 = vmatpush1.bf16.msra.mxu0 %v2100
    %2234 = vmatprep.subr.bf16.mxu0 0
    %2235 = vmatpush1.bf16.msra.mxu0 %v2101
    %2236 = vmatprep.subr.bf16.mxu0 0
    %2237 = vmatpush1.bf16.msra.mxu0 %v2102
    %2238 = vmatprep.subr.bf16.mxu0 0
    %2239 = vmatpush1.bf16.msra.mxu0 %v2103
    %2240 = vmatprep.subr.bf16.mxu0 0
    %2241 = vmatpush1.bf16.msra.mxu0 %v2104
    %2242 = vmatprep.subr.bf16.mxu0 0
    %2243 = vmatpush1.bf16.msra.mxu0 %v2105
    %2244 = vmatprep.subr.bf16.mxu0 0
    %2245 = vmatpush1.bf16.msra.mxu0 %v2106
    %2246 = vmatprep.subr.bf16.mxu0 0
    %2247 = vmatpush1.bf16.msra.mxu0 %v2107
    %2248 = vmatprep.subr.bf16.mxu0 0
    %2249 = vmatpush1.bf16.msra.mxu0 %v2108
    %2250 = vmatprep.subr.bf16.mxu0 0
    %2251 = vmatpush1.bf16.msra.mxu0 %v2109
    %2252 = vmatprep.subr.bf16.mxu0 0
    %2253 = vmatpush1.bf16.msra.mxu0 %v2110
    %2254 = vmatprep.subr.bf16.mxu0 0
    %2255 = vmatpush1.bf16.msra.mxu0 %v2111
    %2256 = vmatprep.mubr.bf16.mxu0 %v1827
    %2257 = vmatmul.mubr.bf16.gmra.mrb[0].mxu0 %v1826
    %v2258 = vpop.f32.mrb[0].mxu0
    %v2259 = vadd.f32 %v1838, %v2258
    %v2260 = vpop.f32.mrb[0].mxu0
    %v2261 = vpop.f32.mrb[0].mxu0
    %v2262 = vpop.f32.mrb[0].mxu0
    %2263 = vdwg.mxu0
    %2264 = vmatprep.subr.bf16.mxu0 0
    %2265 = vmatpush1.bf16.msra.mxu0 %v2112
    %2266 = vmatprep.subr.bf16.mxu0 0
    %2267 = vmatpush1.bf16.msra.mxu0 %v2113
    %2268 = vmatprep.subr.bf16.mxu0 0
    %2269 = vmatpush1.bf16.msra.mxu0 %v2114
    %2270 = vmatprep.subr.bf16.mxu0 0
    %2271 = vmatpush1.bf16.msra.mxu0 %v2115
    %2272 = vmatprep.subr.bf16.mxu0 0
    %2273 = vmatpush1.bf16.msra.mxu0 %v2116
    %2274 = vmatprep.subr.bf16.mxu0 0
    %2275 = vmatpush1.bf16.msra.mxu0 %v2117
    %2276 = vmatprep.subr.bf16.mxu0 0
    %2277 = vmatpush1.bf16.msra.mxu0 %v2118
    %2278 = vmatprep.subr.bf16.mxu0 0
    %2279 = vmatpush1.bf16.msra.mxu0 %v2119
    %2280 = vmatprep.subr.bf16.mxu0 0
    %2281 = vmatpush1.bf16.msra.mxu0 %v2120
    %2282 = vmatprep.subr.bf16.mxu0 0
    %2283 = vmatpush1.bf16.msra.mxu0 %v2121
    %2284 = vmatprep.subr.bf16.mxu0 0
    %2285 = vmatpush1.bf16.msra.mxu0 %v2122
    %2286 = vmatprep.subr.bf16.mxu0 0
    %2287 = vmatpush1.bf16.msra.mxu0 %v2123
    %2288 = vmatprep.subr.bf16.mxu0 0
    %2289 = vmatpush1.bf16.msra.mxu0 %v2124
    %2290 = vmatprep.subr.bf16.mxu0 0
    %2291 = vmatpush1.bf16.msra.mxu0 %v2125
    %2292 = vmatprep.subr.bf16.mxu0 0
    %2293 = vmatpush1.bf16.msra.mxu0 %v2126
    %2294 = vmatprep.subr.bf16.mxu0 0
    %2295 = vmatpush1.bf16.msra.mxu0 %v2127
    %2296 = vmatprep.mubr.bf16.mxu0 %v1829
    %2297 = vmatmul.mubr.bf16.gmra.mrb[0].mxu0 %v1828
    %v2298 = vpop.f32.mrb[0].mxu0
    %v2299 = vadd.f32 %v2259, %v2298
    %v2300 = vpop.f32.mrb[0].mxu0
    %v2301 = vpop.f32.mrb[0].mxu0
    %v2302 = vpop.f32.mrb[0].mxu0
    %2303 = vdwg.mxu0
    %2304 = vmatprep.subr.bf16.mxu0 0
    %2305 = vmatpush1.bf16.msra.mxu0 %v2128
    %2306 = vmatprep.subr.bf16.mxu0 0
    %2307 = vmatpush1.bf16.msra.mxu0 %v2129
    %2308 = vmatprep.subr.bf16.mxu0 0
    %2309 = vmatpush1.bf16.msra.mxu0 %v2130
    %2310 = vmatprep.subr.bf16.mxu0 0
    %2311 = vmatpush1.bf16.msra.mxu0 %v2131
    %2312 = vmatprep.subr.bf16.mxu0 0
    %2313 = vmatpush1.bf16.msra.mxu0 %v2132
    %2314 = vmatprep.subr.bf16.mxu0 0
    %2315 = vmatpush1.bf16.msra.mxu0 %v2133
    %2316 = vmatprep.subr.bf16.mxu0 0
    %2317 = vmatpush1.bf16.msra.mxu0 %v2134
    %2318 = vmatprep.subr.bf16.mxu0 0
    %2319 = vmatpush1.bf16.msra.mxu0 %v2135
    %2320 = vmatprep.subr.bf16.mxu0 0
    %2321 = vmatpush1.bf16.msra.mxu0 %v2136
    %2322 = vmatprep.subr.bf16.mxu0 0
    %2323 = vmatpush1.bf16.msra.mxu0 %v2137
    %2324 = vmatprep.subr.bf16.mxu0 0
    %2325 = vmatpush1.bf16.msra.mxu0 %v2138
    %2326 = vmatprep.subr.bf16.mxu0 0
    %2327 = vmatpush1.bf16.msra.mxu0 %v2139
    %2328 = vmatprep.subr.bf16.mxu0 0
    %2329 = vmatpush1.bf16.msra.mxu0 %v2140
    %2330 = vmatprep.subr.bf16.mxu0 0
    %2331 = vmatpush1.bf16.msra.mxu0 %v2141
    %2332 = vmatprep.subr.bf16.mxu0 0
    %2333 = vmatpush1.bf16.msra.mxu0 %v2142
    %2334 = vmatprep.subr.bf16.mxu0 0
    %2335 = vmatpush1.bf16.msra.mxu0 %v2143
    %2336 = vmatprep.mubr.bf16.mxu0 %v1831
    %2337 = vmatmul.mubr.bf16.gmra.mrb[0].mxu0 %v1830
    %v2338 = vpop.f32.mrb[0].mxu0
    %v2339 = vadd.f32 %v2299, %v2338
    %v2340 = vpop.f32.mrb[0].mxu0
    %v2341 = vpop.f32.mrb[0].mxu0
    %v2342 = vpop.f32.mrb[0].mxu0
    %2343 = vdwg.mxu0
    %2344 = vmatprep.subr.bf16.mxu0 0
    %2345 = vmatpush1.bf16.msra.mxu0 %v2144
    %2346 = vmatprep.subr.bf16.mxu0 0
    %2347 = vmatpush1.bf16.msra.mxu0 %v2145
    %2348 = vmatprep.subr.bf16.mxu0 0
    %2349 = vmatpush1.bf16.msra.mxu0 %v2146
    %2350 = vmatprep.subr.bf16.mxu0 0
    %2351 = vmatpush1.bf16.msra.mxu0 %v2147
    %2352 = vmatprep.subr.bf16.mxu0 0
    %2353 = vmatpush1.bf16.msra.mxu0 %v2148
    %2354 = vmatprep.subr.bf16.mxu0 0
    %2355 = vmatpush1.bf16.msra.mxu0 %v2149
    %2356 = vmatprep.subr.bf16.mxu0 0
    %2357 = vmatpush1.bf16.msra.mxu0 %v2150
    %2358 = vmatprep.subr.bf16.mxu0 0
    %2359 = vmatpush1.bf16.msra.mxu0 %v2151
    %2360 = vmatprep.subr.bf16.mxu0 0
    %2361 = vmatpush1.bf16.msra.mxu0 %v2152
    %2362 = vmatprep.subr.bf16.mxu0 0
    %2363 = vmatpush1.bf16.msra.mxu0 %v2153
    %2364 = vmatprep.subr.bf16.mxu0 0
    %2365 = vmatpush1.bf16.msra.mxu0 %v2154
    %2366 = vmatprep.subr.bf16.mxu0 0
    %2367 = vmatpush1.bf16.msra.mxu0 %v2155
    %2368 = vmatprep.subr.bf16.mxu0 0
    %2369 = vmatpush1.bf16.msra.mxu0 %v2156
    %2370 = vmatprep.subr.bf16.mxu0 0
    %2371 = vmatpush1.bf16.msra.mxu0 %v2157
    %2372 = vmatprep.subr.bf16.mxu0 0
    %2373 = vmatpush1.bf16.msra.mxu0 %v2158
    %2374 = vmatprep.subr.bf16.mxu0 0
    %2375 = vmatpush1.bf16.msra.mxu0 %v2159
    %2376 = vmatprep.mubr.bf16.mxu0 %v1833
    %2377 = vmatmul.mubr.bf16.gmra.mrb[0].mxu0 %v1832
    %v2378 = vpop.f32.mrb[0].mxu0
    %v2379 = vadd.f32 %v2339, %v2378
    %v2380 = vpop.f32.mrb[0].mxu0
    %v2381 = vpop.f32.mrb[0].mxu0
    %v2382 = vpop.f32.mrb[0].mxu0
    %2383 = vdwg.mxu0
    %v2384 = vtanh.pop %v2379
    %v2386 = vrot.slane %v2384, 6
    %v2388 = vsub.f32 %v2384, %v2386
    %v2389 = vmul.f32 %v2388, %v2388
    %v2391 = vrot.slane %v2389, 2
    %vm2393 = vcmask 1041408
    %v2394 = vsel %vm2393, %v2391, 0.0
    %2395 = vadd.xlane.f32.xlu0 %v2394
    %v2396 = vpop.xlane.xlu0 %2395
    %v2397 = vrot.slane %v2396, 4
    %v2398 = vadd.f32 %v2396, %v2397
    %v2399 = vrot.slane %v2398, 2
    %v2400 = vadd.f32 %v2398, %v2399
    %v2401 = vrot.slane %v2400, 1
    %v2402 = vadd.f32 %v2400, %v2401
    %s2403 = vtos %v2402
    %v2404 = vstv %s2403
    %v2405 = vrcp.pop 256.0
    %v2406 = vmul.f32 %v2404, %v2405
    %v2407 = vsub.f32 %v1410, %v27
    %v2408 = vsub.f32 %v1411, %v35
    %v2409 = vsub.f32 %v1412, %v34
    %v2410 = vsub.f32 %v1413, %v36
    %v2411 = vsub.f32 %v1414, %v44
    %v2412 = vsub.f32 %v1415, %v52
    %v2413 = vsub.f32 %v1416, %v51
    %v2414 = vsub.f32 %v1417, %v53
    %v2415 = vand.u32 2147483647, %v2407
    %v2416 = vand.u32 2147483647, %v2408
    %v2417 = vand.u32 2147483647, %v2409
    %v2418 = vand.u32 2147483647, %v2410
    %v2419 = vand.u32 2147483647, %v2411
    %v2420 = vand.u32 2147483647, %v2412
    %v2421 = vand.u32 2147483647, %v2413
    %v2422 = vand.u32 2147483647, %v2414
    %v2423 = vsel %vm2393, %v2415, 0.0
    %v2424 = vsel %vm2393, %v2416, 0.0
    %v2425 = vadd.f32 %v2423, %v2424
    %v2426 = vsel %vm2393, %v2417, 0.0
    %v2427 = vadd.f32 %v2425, %v2426
    %v2428 = vsel %vm2393, %v2418, 0.0
    %v2429 = vadd.f32 %v2427, %v2428
    %v2430 = vsel %vm2393, %v2419, 0.0
    %v2431 = vadd.f32 %v2429, %v2430
    %v2432 = vsel %vm2393, %v2420, 0.0
    %v2433 = vadd.f32 %v2431, %v2432
    %v2434 = vsel %vm2393, %v2421, 0.0
    %v2435 = vadd.f32 %v2433, %v2434
    %v2436 = vsel %vm2393, %v2422, 0.0
    %v2437 = vadd.f32 %v2435, %v2436
    %2438 = vadd.xlane.f32.xlu0 %v2437
    %v2439 = vpop.xlane.xlu0 %2438
    %v2440 = vrot.slane %v2439, 4
    %v2441 = vadd.f32 %v2439, %v2440
    %v2442 = vrot.slane %v2441, 2
    %v2443 = vadd.f32 %v2441, %v2442
    %v2444 = vrot.slane %v2443, 1
    %v2445 = vadd.f32 %v2443, %v2444
    %s2446 = vtos %v2445
    %v2447 = vstv %s2446
    %v2448 = vrcp.pop 2048.0
    %v2449 = vmul.f32 %v2447, %v2448
    %v2450 = vsub.f32 %v1781, %v879
    %v2451 = vmul.f32 %v2450, %v2450
    %vm2452 = vcmask 254976
    %v2453 = vsel %vm2452, %v2451, 0.0
    %2454 = vadd.xlane.f32.xlu0 %v2453
    %v2455 = vpop.xlane.xlu0 %2454
    %v2456 = vrot.slane %v2455, 4
    %v2457 = vadd.f32 %v2455, %v2456
    %v2458 = vrot.slane %v2457, 2
    %v2459 = vadd.f32 %v2457, %v2458
    %v2460 = vrot.slane %v2459, 1
    %v2461 = vadd.f32 %v2459, %v2460
    %s2462 = vtos %v2461
    %v2463 = vstv %s2462
    %v2464 = vrcp.pop 64.0
    %v2465 = vmul.f32 %v2463, %v2464
    %v2466 = vsub.f32 0.0, %v328
    %v2467 = vmul.f32 %v2466, 1.442695
    %v2468 = vpow.pop %v2467
    %v2469 = vmul.f32 %v2468, %v2406
    %v2470 = vadd.f32 %v2469, %v328
    %v2471 = vmul.f32 %v2468, %v2449
    %2473 = vrot.lane.b32.xlu0 %v2471, 127
    %v2474 = vpop.permute.xlu0 %2473
    %v2476 = vadd.f32 %v2470, %v2474
    %2477 = vrot.lane.b32.xlu0 %v328, 127
    %v2478 = vpop.permute.xlu0 %2477
    %v2480 = vadd.f32 %v2476, %v2478
    %v2481 = vmul.f32 %v2468, %v2465
    %2483 = vrot.lane.b32.xlu0 %v2481, 126
    %v2484 = vpop.permute.xlu0 %2483
    %v2486 = vadd.f32 %v2480, %v2484
    %2487 = vrot.lane.b32.xlu0 %v328, 126
    %v2488 = vpop.permute.xlu0 %2487
    %v2490 = vadd.f32 %v2486, %v2488
    %v2491 = vlaneseq
    %v2492 = vand.u32 %v2491, 127
    %vm2493 = vcmp.eq.s32.totalorder %v2492, 0
    %v2495 = vlaneseq
    %v2496 = vshrl.u32 %v2495, 7
    %v2497 = vsub.s32 0, %v2496
    %v2498 = vrot.slane %v2490, %v2497
    %2499 = vset.pattern.permute.xlu0 64
    %2500 = vperm.xlu0 %2499, %v2498
    %v2501 = vpop.permute.xlu0 %2500
    %v2503 = vsel %vm2493, %v2501, 0.0
    %vm2504 = vcmp.eq.s32.totalorder %v2492, 1
    %v2506 = vlaneseq
    %v2507 = vshrl.u32 %v2506, 7
    %v2508 = vsub.s32 0, %v2507
    %v2509 = vrot.slane %v2468, %v2508
    %2510 = vset.pattern.permute.xlu0 64
    %2511 = vperm.xlu0 %2510, %v2509
    %v2512 = vpop.permute.xlu0 %2511
    %v2514 = vsel %vm2504, %v2512, %v2503
    %vm2515 = vcmp.eq.s32.totalorder %v2492, 2
    %2516 = vset.pattern.permute.xlu0 65
    %2517 = vperm.xlu0 %2516, %v2509
    %v2518 = vpop.permute.xlu0 %2517
    %v2520 = vsel %vm2515, %v2518, %v2514
    %vm2521 = vcmp.eq.s32.totalorder %v2492, 3
    %2522 = vset.pattern.permute.xlu0 66
    %2523 = vperm.xlu0 %2522, %v2509
    %v2524 = vpop.permute.xlu0 %2523
    %v2526 = vsel %vm2521, %v2524, %v2520
    %2527 = vst [vmem:[#allocation3] sm:$0xff] %v2526
    // Predicated region
    $region14: #{tpu_custom_call.1} parent=1 // pred_check
      _
    $region15: #{tpu_custom_call.1} parent=1 // pred_check_branch
      %2529 = sbr.rel (0) target = $region17
    $region16: #{tpu_custom_call.1} parent=1 // pred_region
      %s2531 = ssub.s32 128, 128
      %2532 = vsyncadd [#allocation4], %s2531
      %s2534 = sshll.u32 [#allocation3], 4
      %s2535 = int_to_ptr.vmem [resolvable:$true] %s2534
      %2537 = dma.vmem_to_hbm [thread:$0]  %s2535, 128, %s3, [#allocation4]
    $region17: #{tpu_custom_call.1} parent=1 // pred_fallthru
      _
    // Predicated region
    $region18: #{tpu_custom_call.1} parent=1 // pred_check
      _
    $region19: #{tpu_custom_call.1} parent=1 // pred_check_branch
      %2539 = sbr.rel (0) target = $region21
    $region20: #{tpu_custom_call.1} parent=1 // pred_region
      %2540 = dma.done [#allocation4], 128
    $region21: #{tpu_custom_call.1} parent=1 // pred_fallthru
      _
    %2541 = vsyncpa [#allocation4], 1

</llo_original>
